<compile_context>
chip_gen: v6e
topology: v6e:2x2x1
jax: 0.10.0
libtpu: 0.0.40
codegen_flags: <defaults>
</compile_context>

<pallas_src>
import functools

import jax
import jax.numpy as jnp
import numpy as np
from jax.experimental import pallas as pl
from jax.experimental.pallas import tpu as pltpu

DIM = 32          # per-half feature dim (full x feature dim is 2*DIM)
CTX_DIM = 32
HEADS = 2
DIM_HEAD = 16
FF_MULT = 4
EPS = 1e-5
MASK_NEG = 1e9


def _layernorm(v, g, b):
    mu = jnp.mean(v, axis=-1, keepdims=True)
    var = jnp.mean((v - mu) ** 2, axis=-1, keepdims=True)
    return (v - mu) * jax.lax.rsqrt(var + EPS) * g + b


# ---------------------------------------------------------------------------
# Pallas kernel: one reversible half-stream (selected by the grid) for ALL
# batch rows.  PreNorm + multi-head cross-attention + residual, then
# PreNorm + FF + residual.
# ---------------------------------------------------------------------------
def _fused_rev_block_kernel(dim_head,
                            x_ref, ctx_ref, cmask_ref,
                            wq_ref, wkv_ref, wo_ref, bo_ref,
                            ln1g_ref, ln1b_ref,
                            w1_ref, b1_ref, w2_ref, b2_ref,
                            ln2g_ref, ln2b_ref,
                            out_ref):
    f32, bf16 = jnp.float32, jnp.bfloat16
    d = wq_ref.shape[1]                     # per-half feature dim
    inner = wq_ref.shape[2]                 # heads * dim_head
    n_heads = inner // dim_head
    scale = dim_head ** -0.5
    _, B, N, _ = x_ref.shape
    Bc, M, Dc = ctx_ref.shape
    rows = B * N

    # ---- load the (batch, seq) slab for this stream, flatten rows ----
    x_flat = x_ref[0].reshape(rows, 2 * d)                    # (B*N, 2d) f32
    x1 = x_flat[:, :d]
    x2 = x_flat[:, d:]

    # ---- f / j : PreNorm -> CrossAttention(x2, context, context_mask) ----
    x2n = _layernorm(x2, ln1g_ref[0], ln1b_ref[0])
    q_all = jnp.dot(x2n.astype(bf16), wq_ref[0],
                    preferred_element_type=f32) * scale       # (B*N, inner)
    ctx_flat = ctx_ref[...].astype(bf16).reshape(Bc * M, Dc)
    kv_all = jnp.dot(ctx_flat, wkv_ref[0],
                     preferred_element_type=f32)              # (B*M, 2*inner)
    wo = wo_ref[0]                                            # (inner, d) bf16

    f_chunks = []
    for b in range(B):                    # static batch loop (per-batch context)
        neg = (cmask_ref[b] - 1.0) * MASK_NEG                 # (1, M): 0 valid / -1e9 masked
        q_b = q_all[b * N:(b + 1) * N]                        # (N, inner)
        kv_b = kv_all[b * M:(b + 1) * M]                      # (M, 2*inner)
        f_b = None
        for h in range(n_heads):          # static head loop
            lo = h * dim_head
            q_h = q_b[:, lo:lo + dim_head].astype(bf16)
            k_h = kv_b[:, lo:lo + dim_head].astype(bf16)
            v_h = kv_b[:, inner + lo:inner + lo + dim_head].astype(bf16)
            sim = jax.lax.dot_general(q_h, k_h, (((1,), (1,)), ((), ())),
                                      preferred_element_type=f32)   # (N, M)
            sim = sim + neg                                   # key masking
            sim = sim - jnp.max(sim, axis=-1, keepdims=True)
            p = jnp.exp(sim)
            attn = p * pl.reciprocal(jnp.sum(p, axis=-1, keepdims=True),
                                     approx=True)
            o_h = jnp.dot(attn.astype(bf16), v_h, preferred_element_type=f32)
            proj = jnp.dot(o_h.astype(bf16), wo[lo:lo + dim_head, :],
                           preferred_element_type=f32)        # (N, d) accumulate
            f_b = proj if f_b is None else f_b + proj
        f_chunks.append(f_b)
    f_out = f_chunks[0] if B == 1 else jnp.concatenate(f_chunks, axis=0)
    y1 = x1 + f_out + bo_ref[0]

    # ---- g / k : PreNorm -> FeedForward(y1) ----
    y1n = _layernorm(y1, ln2g_ref[0], ln2b_ref[0])
    h1 = jnp.dot(y1n.astype(bf16), w1_ref[0], preferred_element_type=f32) + b1_ref[0]
    # TODO(synk): PyTorch nn.GELU default is exact erf; tanh approximation used here
    # (maps to TPU EUP tanh). The JAX reference below uses the same approximation.
    h1 = jax.nn.gelu(h1, approximate=True)
    g_out = jnp.dot(h1.astype(bf16), w2_ref[0], preferred_element_type=f32) + b2_ref[0]
    y2 = x2 + g_out

    # ---- direct slice writes: no lane-dim concatenate of (y1, y2) ----
    out_ref[0, :, :, :d] = y1.reshape(B, N, d)
    out_ref[0, :, :, d:] = y2.reshape(B, N, d)


# ---------------------------------------------------------------------------
# Wrapper: single pallas_call handling BOTH streams (video=f,g  audio=j,k).
# ---------------------------------------------------------------------------
def reversible_cross_attn_block_forward(x, m, *, context, context_mask,
                                        f_p, g_p, j_p, k_p):
    """Mirrors ReversibleCrossAttnBlock.forward (eval mode, video/audio masks None)."""
    B, Nv, D2 = x.shape
    _, Na, _ = m.shape
    _, Nc, Dc = context.shape
    Nmax = max(Nv, Na)

    def pad_seq(a):
        pad = Nmax - a.shape[1]
        return a if pad == 0 else jnp.pad(a, ((0, 0), (0, pad), (0, 0)))

    # stack the two reversible streams: [0]=video (f,g), [1]=audio (j,k)
    xs = jnp.stack([pad_seq(x), pad_seq(m)], axis=0)            # (2, B, Nmax, D2)
    cmask3 = context_mask.astype(jnp.float32)[:, None, :]       # (B, 1, Nc)
    ctx_bf = context.astype(jnp.bfloat16)                       # halve ctx HBM traffic

    bf16, f32 = jnp.bfloat16, jnp.float32

    def stack(pa, pb, name, dt):
        return jnp.stack([pa[name], pb[name]], axis=0).astype(dt)

    wq_s = stack(f_p, j_p, "wq", bf16)
    wkv_s = jnp.stack(                                          # fused [Wk | Wv]
        [jnp.concatenate([f_p["wk"], f_p["wv"]], axis=1),
         jnp.concatenate([j_p["wk"], j_p["wv"]], axis=1)], axis=0).astype(bf16)
    wo_s = stack(f_p, j_p, "wo", bf16)
    bo_s = stack(f_p, j_p, "bo", f32)
    ln1g_s = stack(f_p, j_p, "ln_g", f32)
    ln1b_s = stack(f_p, j_p, "ln_b", f32)
    w1_s = stack(g_p, k_p, "w1", bf16)
    b1_s = stack(g_p, k_p, "b1", f32)
    w2_s = stack(g_p, k_p, "w2", bf16)
    b2_s = stack(g_p, k_p, "b2", f32)
    ln2g_s = stack(g_p, k_p, "ln_g", f32)
    ln2b_s = stack(g_p, k_p, "ln_b", f32)

    weights = [wq_s, wkv_s, wo_s, bo_s, ln1g_s, ln1b_s,
               w1_s, b1_s, w2_s, b2_s, ln2g_s, ln2b_s]

    def wspec(w):
        r, c = w.shape[1], w.shape[2]
        return pl.BlockSpec((1, r, c), lambda s: (s, 0, 0))     # select stream's weights

    kernel = functools.partial(_fused_rev_block_kernel, DIM_HEAD)

    out = pl.pallas_call(
        kernel,
        out_shape=jax.ShapeDtypeStruct((2, B, Nmax, D2), jnp.float32),
        grid=(2,),                                              # one step per stream
        in_specs=[
            pl.BlockSpec((1, B, Nmax, D2), lambda s: (s, 0, 0, 0)),
            pl.BlockSpec((B, Nc, Dc), lambda s: (0, 0, 0)),     # shared across streams
            pl.BlockSpec((B, 1, Nc), lambda s: (0, 0, 0)),      # shared across streams
        ] + [wspec(w) for w in weights],
        out_specs=pl.BlockSpec((1, B, Nmax, D2), lambda s: (s, 0, 0, 0)),
        compiler_params=pltpu.CompilerParams(dimension_semantics=("parallel",)),
    )(xs, ctx_bf, cmask3, *weights)

    y = out[0, :, :Nv]
    n = out[1, :, :Na]
    return y, n


# ---------------------------------------------------------------------------
# Deterministic parameter init (synthetic weights; shapes from the module's __init__).
# ---------------------------------------------------------------------------
def init_cross_attn_params(key):
    inner = HEADS * DIM_HEAD
    ks = jax.random.split(key, 4)
    return dict(
        wq=0.05 * jax.random.normal(ks[0], (DIM, inner), jnp.float32),
        wk=0.05 * jax.random.normal(ks[1], (CTX_DIM, inner), jnp.float32),
        wv=0.05 * jax.random.normal(ks[2], (CTX_DIM, inner), jnp.float32),
        wo=0.05 * jax.random.normal(ks[3], (inner, DIM), jnp.float32),
        bo=jnp.zeros((1, DIM), jnp.float32),
        ln_g=jnp.ones((1, DIM), jnp.float32),
        ln_b=jnp.zeros((1, DIM), jnp.float32),
    )


def init_ff_params(key):
    dff = DIM * FF_MULT
    ks = jax.random.split(key, 2)
    return dict(
        w1=0.05 * jax.random.normal(ks[0], (DIM, dff), jnp.float32),
        b1=jnp.zeros((1, dff), jnp.float32),
        w2=0.05 * jax.random.normal(ks[1], (dff, DIM), jnp.float32),
        b2=jnp.zeros((1, DIM), jnp.float32),
        ln_g=jnp.ones((1, DIM), jnp.float32),
        ln_b=jnp.zeros((1, DIM), jnp.float32),
    )


# ---------------------------------------------------------------------------
# Pure-JAX reference (full f32) for a correctness check.
# ---------------------------------------------------------------------------
def _half_reference(x, context, context_mask, ap, fp):
    hp = jax.lax.Precision.HIGHEST
    d = DIM
    x1, x2 = x[..., :d], x[..., d:]
    x2n = _layernorm(x2, ap["ln_g"], ap["ln_b"])
    q = jnp.einsum("bnd,de->bne", x2n, ap["wq"], precision=hp) * (DIM_HEAD ** -0.5)
    k = jnp.einsum("bmd,de->bme", context, ap["wk"], precision=hp)
    v = jnp.einsum("bmd,de->bme", context, ap["wv"], precision=hp)
    B, N, _ = q.shape
    M = k.shape[1]
    qh = q.reshape(B, N, HEADS, DIM_HEAD).transpose(0, 2, 1, 3)
    kh = k.reshape(B, M, HEADS, DIM_HEAD).transpose(0, 2, 1, 3)
    vh = v.reshape(B, M, HEADS, DIM_HEAD).transpose(0, 2, 1, 3)
    sim = jnp.einsum("bhnd,bhmd->bhnm", qh, kh, precision=hp)
    sim = sim + (context_mask.astype(jnp.float32)[:, None, None, :] - 1.0) * MASK_NEG
    sim = sim - jnp.max(sim, axis=-1, keepdims=True)
    p = jnp.exp(sim)
    attn = p / jnp.sum(p, axis=-1, keepdims=True)
    oh = jnp.einsum("bhnm,bhmd->bhnd", attn, vh, precision=hp)
    o = oh.transpose(0, 2, 1, 3).reshape(B, N, HEADS * DIM_HEAD)
    y1 = x1 + jnp.einsum("bne,ed->bnd", o, ap["wo"], precision=hp) + ap["bo"]
    y1n = _layernorm(y1, fp["ln_g"], fp["ln_b"])
    h1 = jax.nn.gelu(
        jnp.einsum("bnd,df->bnf", y1n, fp["w1"], precision=hp) + fp["b1"],
        approximate=True)
    y2 = x2 + jnp.einsum("bnf,fd->bnd", h1, fp["w2"], precision=hp) + fp["b2"]
    return jnp.concatenate([y1, y2], axis=-1)


if __name__ == "__main__":
    key = jax.random.PRNGKey(0)
    B, Nv, Na, Nc = 2, 8, 16, 8          # video / audio sequence lengths differ
    k_x, k_m, k_ctx, kf, kg, kj, kk = jax.random.split(key, 7)

    x = jax.random.normal(k_x, (B, Nv, 2 * DIM), jnp.float32)
    m = jax.random.normal(k_m, (B, Na, 2 * DIM), jnp.float32)
    context = jax.random.normal(k_ctx, (B, Nc, CTX_DIM), jnp.float32)
    # ragged context: batch 0 all valid, batch 1 has last 2 keys masked out
    context_mask = jnp.arange(Nc)[None, :] < jnp.array([[Nc], [Nc - 2]])

    f_p = init_cross_attn_params(kf)   # video cross-attention
    g_p = init_ff_params(kg)           # video feed-forward
    j_p = init_cross_attn_params(kj)   # audio cross-attention
    k_p = init_ff_params(kk)           # audio feed-forward

    y, n = reversible_cross_attn_block_forward(
        x, m, context=context, context_mask=context_mask,
        f_p=f_p, g_p=g_p, j_p=j_p, k_p=k_p)
    jax.block_until_ready((y, n))

    y_ref = _half_reference(x, context, context_mask, f_p, g_p)
    n_ref = _half_reference(m, context, context_mask, j_p, k_p)
    # Tolerance loosened vs. the f32 HIGHEST-precision reference because the kernel
    # runs its matmuls in bfloat16 (with f32 accumulation), per the perf review.
    np.testing.assert_allclose(np.asarray(y), np.asarray(y_ref), rtol=2e-2, atol=2e-2)
    np.testing.assert_allclose(np.asarray(n), np.asarray(n_ref), rtol=2e-2, atol=2e-2)

    print("KERNEL_OK")
</pallas_src>

<mosaic_0001>
module attributes {stable_mosaic.version = 11 : i64} {
  func.func @_fused_rev_block_kernel(%arg0: i32, %arg1: memref<1x2x16x64xf32, #tpu.memory_space<vmem>>, %arg2: memref<2x8x32xbf16, #tpu.memory_space<vmem>>, %arg3: memref<2x1x8xf32, #tpu.memory_space<vmem>>, %arg4: memref<1x32x32xbf16, #tpu.memory_space<vmem>>, %arg5: memref<1x32x64xbf16, #tpu.memory_space<vmem>>, %arg6: memref<1x32x32xbf16, #tpu.memory_space<vmem>>, %arg7: memref<1x1x32xf32, #tpu.memory_space<vmem>>, %arg8: memref<1x1x32xf32, #tpu.memory_space<vmem>>, %arg9: memref<1x1x32xf32, #tpu.memory_space<vmem>>, %arg10: memref<1x32x128xbf16, #tpu.memory_space<vmem>>, %arg11: memref<1x1x128xf32, #tpu.memory_space<vmem>>, %arg12: memref<1x128x32xbf16, #tpu.memory_space<vmem>>, %arg13: memref<1x1x32xf32, #tpu.memory_space<vmem>>, %arg14: memref<1x1x32xf32, #tpu.memory_space<vmem>>, %arg15: memref<1x1x32xf32, #tpu.memory_space<vmem>>, %arg16: memref<1x2x16x64xf32, #tpu.memory_space<vmem>>) attributes {dimension_semantics = [#tpu.dimension_semantics<parallel>], iteration_bounds = array<i64: 2>, scalar_prefetch = 0 : i64, scratch_operands = 0 : i64, tpu.core_type = #tpu.core_type<tc>, window_params = [{transform_indices = @transform_0, window_bounds = array<i64: 1, 2, 16, 64>}, {pipeline_mode = #tpu.pipeline_mode<synchronous>, transform_indices = @transform_1, window_bounds = array<i64: 2, 8, 32>}, {pipeline_mode = #tpu.pipeline_mode<synchronous>, transform_indices = @transform_2, window_bounds = array<i64: 2, 1, 8>}, {transform_indices = @transform_3, window_bounds = array<i64: 1, 32, 32>}, {transform_indices = @transform_4, window_bounds = array<i64: 1, 32, 64>}, {transform_indices = @transform_5, window_bounds = array<i64: 1, 32, 32>}, {transform_indices = @transform_6, window_bounds = array<i64: 1, 1, 32>}, {transform_indices = @transform_7, window_bounds = array<i64: 1, 1, 32>}, {transform_indices = @transform_8, window_bounds = array<i64: 1, 1, 32>}, {transform_indices = @transform_9, window_bounds = array<i64: 1, 32, 128>}, {transform_indices = @transform_10, window_bounds = array<i64: 1, 1, 128>}, {transform_indices = @transform_11, window_bounds = array<i64: 1, 128, 32>}, {transform_indices = @transform_12, window_bounds = array<i64: 1, 1, 32>}, {transform_indices = @transform_13, window_bounds = array<i64: 1, 1, 32>}, {transform_indices = @transform_14, window_bounds = array<i64: 1, 1, 32>}, {transform_indices = @transform_15, window_bounds = array<i64: 1, 2, 16, 64>}]} {
    %c0 = arith.constant 0 : index
    %c0_0 = arith.constant 0 : index
    %c0_1 = arith.constant 0 : index
    %c0_2 = arith.constant 0 : index
    %0 = vector.load %arg1[%c0, %c0_0, %c0_1, %c0_2] : memref<1x2x16x64xf32, #tpu.memory_space<vmem>>, vector<1x2x16x64xf32>
    %1 = vector.shape_cast %0 : vector<1x2x16x64xf32> to vector<2x16x64xf32>
    %2 = vector.shape_cast %1 : vector<2x16x64xf32> to vector<32x64xf32>
    %3 = vector.extract_strided_slice %2 {offsets = [0, 0], sizes = [32, 32], strides = [1, 1]} : vector<32x64xf32> to vector<32x32xf32>
    %4 = vector.extract_strided_slice %2 {offsets = [0, 32], sizes = [32, 32], strides = [1, 1]} : vector<32x64xf32> to vector<32x32xf32>
    %c0_3 = arith.constant 0 : index
    %c0_4 = arith.constant 0 : index
    %c0_5 = arith.constant 0 : index
    %5 = vector.load %arg8[%c0_3, %c0_4, %c0_5] : memref<1x1x32xf32, #tpu.memory_space<vmem>>, vector<1x1x32xf32>
    %6 = vector.shape_cast %5 : vector<1x1x32xf32> to vector<1x32xf32>
    %c0_6 = arith.constant 0 : index
    %c0_7 = arith.constant 0 : index
    %c0_8 = arith.constant 0 : index
    %7 = vector.load %arg9[%c0_6, %c0_7, %c0_8] : memref<1x1x32xf32, #tpu.memory_space<vmem>>, vector<1x1x32xf32>
    %8 = vector.shape_cast %7 : vector<1x1x32xf32> to vector<1x32xf32>
    %cst = arith.constant dense<0.000000e+00> : vector<32xf32>
    %9 = vector.multi_reduction <add>, %4, %cst [1] : vector<32x32xf32> to vector<32xf32>
    %10 = vector.shape_cast %9 : vector<32xf32> to vector<32x1xf32>
    %cst_9 = arith.constant 3.200000e+01 : f32
    %11 = vector.broadcast %cst_9 : f32 to vector<32x1xf32>
    %12 = arith.divf %10, %11 : vector<32x1xf32>
    %13 = vector.broadcast %12 : vector<32x1xf32> to vector<32x32xf32>
    %14 = arith.subf %4, %13 : vector<32x32xf32>
    %15 = arith.mulf %14, %14 : vector<32x32xf32>
    %cst_10 = arith.constant dense<0.000000e+00> : vector<32xf32>
    %16 = vector.multi_reduction <add>, %15, %cst_10 [1] : vector<32x32xf32> to vector<32xf32>
    %17 = vector.shape_cast %16 : vector<32xf32> to vector<32x1xf32>
    %cst_11 = arith.constant 3.200000e+01 : f32
    %18 = vector.broadcast %cst_11 : f32 to vector<32x1xf32>
    %19 = arith.divf %17, %18 : vector<32x1xf32>
    %20 = vector.broadcast %12 : vector<32x1xf32> to vector<32x32xf32>
    %21 = arith.subf %4, %20 : vector<32x32xf32>
    %cst_12 = arith.constant 9.99999974E-6 : f32
    %22 = vector.broadcast %cst_12 : f32 to vector<32x1xf32>
    %23 = arith.addf %19, %22 : vector<32x1xf32>
    %24 = math.rsqrt %23 : vector<32x1xf32>
    %25 = vector.broadcast %24 : vector<32x1xf32> to vector<32x32xf32>
    %26 = arith.mulf %21, %25 : vector<32x32xf32>
    %27 = vector.broadcast %6 : vector<1x32xf32> to vector<32x32xf32>
    %28 = arith.mulf %26, %27 : vector<32x32xf32>
    %29 = vector.broadcast %8 : vector<1x32xf32> to vector<32x32xf32>
    %30 = arith.addf %28, %29 : vector<32x32xf32>
    %31 = arith.truncf %30 : vector<32x32xf32> to vector<32x32xbf16>
    %c0_13 = arith.constant 0 : index
    %c0_14 = arith.constant 0 : index
    %c0_15 = arith.constant 0 : index
    %32 = vector.load %arg4[%c0_13, %c0_14, %c0_15] : memref<1x32x32xbf16, #tpu.memory_space<vmem>>, vector<1x32x32xbf16>
    %33 = vector.shape_cast %32 : vector<1x32x32xbf16> to vector<32x32xbf16>
    %cst_16 = arith.constant dense<0.000000e+00> : vector<32x32xf32>
    %34 = tpu.matmul %31, %33, %cst_16 {dimension_numbers = #tpu.dot_dimension_numbers<[1], [0], [0], [1], [0, 0, 1, 1], [], []>} : vector<32x32xbf16>, vector<32x32xbf16>, vector<32x32xf32> -> vector<32x32xf32>
    %cst_17 = arith.constant 2.500000e-01 : f32
    %35 = vector.broadcast %cst_17 : f32 to vector<32x32xf32>
    %36 = arith.mulf %34, %35 : vector<32x32xf32>
    %c0_18 = arith.constant 0 : index
    %c0_19 = arith.constant 0 : index
    %c0_20 = arith.constant 0 : index
    %37 = vector.load %arg2[%c0_18, %c0_19, %c0_20] : memref<2x8x32xbf16, #tpu.memory_space<vmem>>, vector<2x8x32xbf16>
    %38 = vector.shape_cast %37 : vector<2x8x32xbf16> to vector<16x32xbf16>
    %c0_21 = arith.constant 0 : index
    %c0_22 = arith.constant 0 : index
    %c0_23 = arith.constant 0 : index
    %39 = vector.load %arg5[%c0_21, %c0_22, %c0_23] : memref<1x32x64xbf16, #tpu.memory_space<vmem>>, vector<1x32x64xbf16>
    %40 = vector.shape_cast %39 : vector<1x32x64xbf16> to vector<32x64xbf16>
    %cst_24 = arith.constant dense<0.000000e+00> : vector<16x64xf32>
    %41 = tpu.matmul %38, %40, %cst_24 {dimension_numbers = #tpu.dot_dimension_numbers<[1], [0], [0], [1], [0, 0, 1, 1], [], []>} : vector<16x32xbf16>, vector<32x64xbf16>, vector<16x64xf32> -> vector<16x64xf32>
    %c0_25 = arith.constant 0 : index
    %c0_26 = arith.constant 0 : index
    %c0_27 = arith.constant 0 : index
    %42 = vector.load %arg6[%c0_25, %c0_26, %c0_27] : memref<1x32x32xbf16, #tpu.memory_space<vmem>>, vector<1x32x32xbf16>
    %43 = vector.shape_cast %42 : vector<1x32x32xbf16> to vector<32x32xbf16>
    %c0_28 = arith.constant 0 : index
    %c0_29 = arith.constant 0 : index
    %c0_30 = arith.constant 0 : index
    %44 = vector.load %arg3[%c0_28, %c0_29, %c0_30] : memref<2x1x8xf32, #tpu.memory_space<vmem>>, vector<1x1x8xf32>
    %45 = vector.shape_cast %44 : vector<1x1x8xf32> to vector<1x8xf32>
    %cst_31 = arith.constant 1.000000e+00 : f32
    %46 = vector.broadcast %cst_31 : f32 to vector<1x8xf32>
    %47 = arith.subf %45, %46 : vector<1x8xf32>
    %cst_32 = arith.constant 1.000000e+09 : f32
    %48 = vector.broadcast %cst_32 : f32 to vector<1x8xf32>
    %49 = arith.mulf %47, %48 : vector<1x8xf32>
    %50 = vector.extract_strided_slice %36 {offsets = [0, 0], sizes = [16, 32], strides = [1, 1]} : vector<32x32xf32> to vector<16x32xf32>
    %51 = vector.extract_strided_slice %41 {offsets = [0, 0], sizes = [8, 64], strides = [1, 1]} : vector<16x64xf32> to vector<8x64xf32>
    %52 = vector.extract_strided_slice %50 {offsets = [0, 0], sizes = [16, 16], strides = [1, 1]} : vector<16x32xf32> to vector<16x16xf32>
    %53 = arith.truncf %52 : vector<16x16xf32> to vector<16x16xbf16>
    %54 = vector.extract_strided_slice %51 {offsets = [0, 0], sizes = [8, 16], strides = [1, 1]} : vector<8x64xf32> to vector<8x16xf32>
    %55 = arith.truncf %54 : vector<8x16xf32> to vector<8x16xbf16>
    %56 = vector.extract_strided_slice %51 {offsets = [0, 32], sizes = [8, 16], strides = [1, 1]} : vector<8x64xf32> to vector<8x16xf32>
    %57 = arith.truncf %56 : vector<8x16xf32> to vector<8x16xbf16>
    %cst_33 = arith.constant dense<0.000000e+00> : vector<16x8xf32>
    %58 = tpu.matmul %53, %55, %cst_33 {dimension_numbers = #tpu.dot_dimension_numbers<[1], [1], [0], [0], [0, 0, 1, 0], [], []>} : vector<16x16xbf16>, vector<8x16xbf16>, vector<16x8xf32> -> vector<16x8xf32>
    %59 = vector.broadcast %49 : vector<1x8xf32> to vector<16x8xf32>
    %60 = arith.addf %58, %59 : vector<16x8xf32>
    %cst_34 = arith.constant dense<0xFF800000> : vector<16xf32>
    %61 = vector.multi_reduction <maximumf>, %60, %cst_34 [1] : vector<16x8xf32> to vector<16xf32>
    %62 = vector.shape_cast %61 : vector<16xf32> to vector<16x1xf32>
    %63 = vector.broadcast %62 : vector<16x1xf32> to vector<16x8xf32>
    %64 = arith.subf %60, %63 : vector<16x8xf32>
    %65 = math.exp %64 : vector<16x8xf32>
    %cst_35 = arith.constant dense<0.000000e+00> : vector<16xf32>
    %66 = vector.multi_reduction <add>, %65, %cst_35 [1] : vector<16x8xf32> to vector<16xf32>
    %67 = vector.shape_cast %66 : vector<16xf32> to vector<16x1xf32>
    %68 = tpu.reciprocal %67 {approx = true} : vector<16x1xf32> -> vector<16x1xf32>
    %69 = vector.broadcast %68 : vector<16x1xf32> to vector<16x8xf32>
    %70 = arith.mulf %65, %69 : vector<16x8xf32>
    %71 = arith.truncf %70 : vector<16x8xf32> to vector<16x8xbf16>
    %cst_36 = arith.constant dense<0.000000e+00> : vector<16x16xf32>
    %72 = tpu.matmul %71, %57, %cst_36 {dimension_numbers = #tpu.dot_dimension_numbers<[1], [0], [0], [1], [0, 0, 1, 1], [], []>} : vector<16x8xbf16>, vector<8x16xbf16>, vector<16x16xf32> -> vector<16x16xf32>
    %73 = arith.truncf %72 : vector<16x16xf32> to vector<16x16xbf16>
    %74 = vector.extract_strided_slice %43 {offsets = [0, 0], sizes = [16, 32], strides = [1, 1]} : vector<32x32xbf16> to vector<16x32xbf16>
    %cst_37 = arith.constant dense<0.000000e+00> : vector<16x32xf32>
    %75 = tpu.matmul %73, %74, %cst_37 {dimension_numbers = #tpu.dot_dimension_numbers<[1], [0], [0], [1], [0, 0, 1, 1], [], []>} : vector<16x16xbf16>, vector<16x32xbf16>, vector<16x32xf32> -> vector<16x32xf32>
    %76 = vector.extract_strided_slice %50 {offsets = [0, 16], sizes = [16, 16], strides = [1, 1]} : vector<16x32xf32> to vector<16x16xf32>
    %77 = arith.truncf %76 : vector<16x16xf32> to vector<16x16xbf16>
    %78 = vector.extract_strided_slice %51 {offsets = [0, 16], sizes = [8, 16], strides = [1, 1]} : vector<8x64xf32> to vector<8x16xf32>
    %79 = arith.truncf %78 : vector<8x16xf32> to vector<8x16xbf16>
    %80 = vector.extract_strided_slice %51 {offsets = [0, 48], sizes = [8, 16], strides = [1, 1]} : vector<8x64xf32> to vector<8x16xf32>
    %81 = arith.truncf %80 : vector<8x16xf32> to vector<8x16xbf16>
    %cst_38 = arith.constant dense<0.000000e+00> : vector<16x8xf32>
    %82 = tpu.matmul %77, %79, %cst_38 {dimension_numbers = #tpu.dot_dimension_numbers<[1], [1], [0], [0], [0, 0, 1, 0], [], []>} : vector<16x16xbf16>, vector<8x16xbf16>, vector<16x8xf32> -> vector<16x8xf32>
    %83 = vector.broadcast %49 : vector<1x8xf32> to vector<16x8xf32>
    %84 = arith.addf %82, %83 : vector<16x8xf32>
    %cst_39 = arith.constant dense<0xFF800000> : vector<16xf32>
    %85 = vector.multi_reduction <maximumf>, %84, %cst_39 [1] : vector<16x8xf32> to vector<16xf32>
    %86 = vector.shape_cast %85 : vector<16xf32> to vector<16x1xf32>
    %87 = vector.broadcast %86 : vector<16x1xf32> to vector<16x8xf32>
    %88 = arith.subf %84, %87 : vector<16x8xf32>
    %89 = math.exp %88 : vector<16x8xf32>
    %cst_40 = arith.constant dense<0.000000e+00> : vector<16xf32>
    %90 = vector.multi_reduction <add>, %89, %cst_40 [1] : vector<16x8xf32> to vector<16xf32>
    %91 = vector.shape_cast %90 : vector<16xf32> to vector<16x1xf32>
    %92 = tpu.reciprocal %91 {approx = true} : vector<16x1xf32> -> vector<16x1xf32>
    %93 = vector.broadcast %92 : vector<16x1xf32> to vector<16x8xf32>
    %94 = arith.mulf %89, %93 : vector<16x8xf32>
    %95 = arith.truncf %94 : vector<16x8xf32> to vector<16x8xbf16>
    %cst_41 = arith.constant dense<0.000000e+00> : vector<16x16xf32>
    %96 = tpu.matmul %95, %81, %cst_41 {dimension_numbers = #tpu.dot_dimension_numbers<[1], [0], [0], [1], [0, 0, 1, 1], [], []>} : vector<16x8xbf16>, vector<8x16xbf16>, vector<16x16xf32> -> vector<16x16xf32>
    %97 = arith.truncf %96 : vector<16x16xf32> to vector<16x16xbf16>
    %98 = vector.extract_strided_slice %43 {offsets = [16, 0], sizes = [16, 32], strides = [1, 1]} : vector<32x32xbf16> to vector<16x32xbf16>
    %cst_42 = arith.constant dense<0.000000e+00> : vector<16x32xf32>
    %99 = tpu.matmul %97, %98, %cst_42 {dimension_numbers = #tpu.dot_dimension_numbers<[1], [0], [0], [1], [0, 0, 1, 1], [], []>} : vector<16x16xbf16>, vector<16x32xbf16>, vector<16x32xf32> -> vector<16x32xf32>
    %100 = arith.addf %75, %99 : vector<16x32xf32>
    %c1 = arith.constant 1 : index
    %c0_43 = arith.constant 0 : index
    %c0_44 = arith.constant 0 : index
    %101 = vector.load %arg3[%c1, %c0_43, %c0_44] : memref<2x1x8xf32, #tpu.memory_space<vmem>>, vector<1x1x8xf32>
    %102 = vector.shape_cast %101 : vector<1x1x8xf32> to vector<1x8xf32>
    %cst_45 = arith.constant 1.000000e+00 : f32
    %103 = vector.broadcast %cst_45 : f32 to vector<1x8xf32>
    %104 = arith.subf %102, %103 : vector<1x8xf32>
    %cst_46 = arith.constant 1.000000e+09 : f32
    %105 = vector.broadcast %cst_46 : f32 to vector<1x8xf32>
    %106 = arith.mulf %104, %105 : vector<1x8xf32>
    %107 = vector.extract_strided_slice %36 {offsets = [16, 0], sizes = [16, 32], strides = [1, 1]} : vector<32x32xf32> to vector<16x32xf32>
    %108 = vector.extract_strided_slice %41 {offsets = [8, 0], sizes = [8, 64], strides = [1, 1]} : vector<16x64xf32> to vector<8x64xf32>
    %109 = vector.extract_strided_slice %107 {offsets = [0, 0], sizes = [16, 16], strides = [1, 1]} : vector<16x32xf32> to vector<16x16xf32>
    %110 = arith.truncf %109 : vector<16x16xf32> to vector<16x16xbf16>
    %111 = vector.extract_strided_slice %108 {offsets = [0, 0], sizes = [8, 16], strides = [1, 1]} : vector<8x64xf32> to vector<8x16xf32>
    %112 = arith.truncf %111 : vector<8x16xf32> to vector<8x16xbf16>
    %113 = vector.extract_strided_slice %108 {offsets = [0, 32], sizes = [8, 16], strides = [1, 1]} : vector<8x64xf32> to vector<8x16xf32>
    %114 = arith.truncf %113 : vector<8x16xf32> to vector<8x16xbf16>
    %cst_47 = arith.constant dense<0.000000e+00> : vector<16x8xf32>
    %115 = tpu.matmul %110, %112, %cst_47 {dimension_numbers = #tpu.dot_dimension_numbers<[1], [1], [0], [0], [0, 0, 1, 0], [], []>} : vector<16x16xbf16>, vector<8x16xbf16>, vector<16x8xf32> -> vector<16x8xf32>
    %116 = vector.broadcast %106 : vector<1x8xf32> to vector<16x8xf32>
    %117 = arith.addf %115, %116 : vector<16x8xf32>
    %cst_48 = arith.constant dense<0xFF800000> : vector<16xf32>
    %118 = vector.multi_reduction <maximumf>, %117, %cst_48 [1] : vector<16x8xf32> to vector<16xf32>
    %119 = vector.shape_cast %118 : vector<16xf32> to vector<16x1xf32>
    %120 = vector.broadcast %119 : vector<16x1xf32> to vector<16x8xf32>
    %121 = arith.subf %117, %120 : vector<16x8xf32>
    %122 = math.exp %121 : vector<16x8xf32>
    %cst_49 = arith.constant dense<0.000000e+00> : vector<16xf32>
    %123 = vector.multi_reduction <add>, %122, %cst_49 [1] : vector<16x8xf32> to vector<16xf32>
    %124 = vector.shape_cast %123 : vector<16xf32> to vector<16x1xf32>
    %125 = tpu.reciprocal %124 {approx = true} : vector<16x1xf32> -> vector<16x1xf32>
    %126 = vector.broadcast %125 : vector<16x1xf32> to vector<16x8xf32>
    %127 = arith.mulf %122, %126 : vector<16x8xf32>
    %128 = arith.truncf %127 : vector<16x8xf32> to vector<16x8xbf16>
    %cst_50 = arith.constant dense<0.000000e+00> : vector<16x16xf32>
    %129 = tpu.matmul %128, %114, %cst_50 {dimension_numbers = #tpu.dot_dimension_numbers<[1], [0], [0], [1], [0, 0, 1, 1], [], []>} : vector<16x8xbf16>, vector<8x16xbf16>, vector<16x16xf32> -> vector<16x16xf32>
    %130 = arith.truncf %129 : vector<16x16xf32> to vector<16x16xbf16>
    %131 = vector.extract_strided_slice %43 {offsets = [0, 0], sizes = [16, 32], strides = [1, 1]} : vector<32x32xbf16> to vector<16x32xbf16>
    %cst_51 = arith.constant dense<0.000000e+00> : vector<16x32xf32>
    %132 = tpu.matmul %130, %131, %cst_51 {dimension_numbers = #tpu.dot_dimension_numbers<[1], [0], [0], [1], [0, 0, 1, 1], [], []>} : vector<16x16xbf16>, vector<16x32xbf16>, vector<16x32xf32> -> vector<16x32xf32>
    %133 = vector.extract_strided_slice %107 {offsets = [0, 16], sizes = [16, 16], strides = [1, 1]} : vector<16x32xf32> to vector<16x16xf32>
    %134 = arith.truncf %133 : vector<16x16xf32> to vector<16x16xbf16>
    %135 = vector.extract_strided_slice %108 {offsets = [0, 16], sizes = [8, 16], strides = [1, 1]} : vector<8x64xf32> to vector<8x16xf32>
    %136 = arith.truncf %135 : vector<8x16xf32> to vector<8x16xbf16>
    %137 = vector.extract_strided_slice %108 {offsets = [0, 48], sizes = [8, 16], strides = [1, 1]} : vector<8x64xf32> to vector<8x16xf32>
    %138 = arith.truncf %137 : vector<8x16xf32> to vector<8x16xbf16>
    %cst_52 = arith.constant dense<0.000000e+00> : vector<16x8xf32>
    %139 = tpu.matmul %134, %136, %cst_52 {dimension_numbers = #tpu.dot_dimension_numbers<[1], [1], [0], [0], [0, 0, 1, 0], [], []>} : vector<16x16xbf16>, vector<8x16xbf16>, vector<16x8xf32> -> vector<16x8xf32>
    %140 = vector.broadcast %106 : vector<1x8xf32> to vector<16x8xf32>
    %141 = arith.addf %139, %140 : vector<16x8xf32>
    %cst_53 = arith.constant dense<0xFF800000> : vector<16xf32>
    %142 = vector.multi_reduction <maximumf>, %141, %cst_53 [1] : vector<16x8xf32> to vector<16xf32>
    %143 = vector.shape_cast %142 : vector<16xf32> to vector<16x1xf32>
    %144 = vector.broadcast %143 : vector<16x1xf32> to vector<16x8xf32>
    %145 = arith.subf %141, %144 : vector<16x8xf32>
    %146 = math.exp %145 : vector<16x8xf32>
    %cst_54 = arith.constant dense<0.000000e+00> : vector<16xf32>
    %147 = vector.multi_reduction <add>, %146, %cst_54 [1] : vector<16x8xf32> to vector<16xf32>
    %148 = vector.shape_cast %147 : vector<16xf32> to vector<16x1xf32>
    %149 = tpu.reciprocal %148 {approx = true} : vector<16x1xf32> -> vector<16x1xf32>
    %150 = vector.broadcast %149 : vector<16x1xf32> to vector<16x8xf32>
    %151 = arith.mulf %146, %150 : vector<16x8xf32>
    %152 = arith.truncf %151 : vector<16x8xf32> to vector<16x8xbf16>
    %cst_55 = arith.constant dense<0.000000e+00> : vector<16x16xf32>
    %153 = tpu.matmul %152, %138, %cst_55 {dimension_numbers = #tpu.dot_dimension_numbers<[1], [0], [0], [1], [0, 0, 1, 1], [], []>} : vector<16x8xbf16>, vector<8x16xbf16>, vector<16x16xf32> -> vector<16x16xf32>
    %154 = arith.truncf %153 : vector<16x16xf32> to vector<16x16xbf16>
    %155 = vector.extract_strided_slice %43 {offsets = [16, 0], sizes = [16, 32], strides = [1, 1]} : vector<32x32xbf16> to vector<16x32xbf16>
    %cst_56 = arith.constant dense<0.000000e+00> : vector<16x32xf32>
    %156 = tpu.matmul %154, %155, %cst_56 {dimension_numbers = #tpu.dot_dimension_numbers<[1], [0], [0], [1], [0, 0, 1, 1], [], []>} : vector<16x16xbf16>, vector<16x32xbf16>, vector<16x32xf32> -> vector<16x32xf32>
    %157 = arith.addf %132, %156 : vector<16x32xf32>
    %158 = tpu.concatenate %100, %157 in 0 : vector<16x32xf32>, vector<16x32xf32> -> vector<32x32xf32>
    %159 = arith.addf %3, %158 : vector<32x32xf32>
    %c0_57 = arith.constant 0 : index
    %c0_58 = arith.constant 0 : index
    %c0_59 = arith.constant 0 : index
    %160 = vector.load %arg7[%c0_57, %c0_58, %c0_59] : memref<1x1x32xf32, #tpu.memory_space<vmem>>, vector<1x1x32xf32>
    %161 = vector.shape_cast %160 : vector<1x1x32xf32> to vector<1x32xf32>
    %162 = vector.broadcast %161 : vector<1x32xf32> to vector<32x32xf32>
    %163 = arith.addf %159, %162 : vector<32x32xf32>
    %c0_60 = arith.constant 0 : index
    %c0_61 = arith.constant 0 : index
    %c0_62 = arith.constant 0 : index
    %164 = vector.load %arg14[%c0_60, %c0_61, %c0_62] : memref<1x1x32xf32, #tpu.memory_space<vmem>>, vector<1x1x32xf32>
    %165 = vector.shape_cast %164 : vector<1x1x32xf32> to vector<1x32xf32>
    %c0_63 = arith.constant 0 : index
    %c0_64 = arith.constant 0 : index
    %c0_65 = arith.constant 0 : index
    %166 = vector.load %arg15[%c0_63, %c0_64, %c0_65] : memref<1x1x32xf32, #tpu.memory_space<vmem>>, vector<1x1x32xf32>
    %167 = vector.shape_cast %166 : vector<1x1x32xf32> to vector<1x32xf32>
    %cst_66 = arith.constant dense<0.000000e+00> : vector<32xf32>
    %168 = vector.multi_reduction <add>, %163, %cst_66 [1] : vector<32x32xf32> to vector<32xf32>
    %169 = vector.shape_cast %168 : vector<32xf32> to vector<32x1xf32>
    %cst_67 = arith.constant 3.200000e+01 : f32
    %170 = vector.broadcast %cst_67 : f32 to vector<32x1xf32>
    %171 = arith.divf %169, %170 : vector<32x1xf32>
    %172 = vector.broadcast %171 : vector<32x1xf32> to vector<32x32xf32>
    %173 = arith.subf %163, %172 : vector<32x32xf32>
    %174 = arith.mulf %173, %173 : vector<32x32xf32>
    %cst_68 = arith.constant dense<0.000000e+00> : vector<32xf32>
    %175 = vector.multi_reduction <add>, %174, %cst_68 [1] : vector<32x32xf32> to vector<32xf32>
    %176 = vector.shape_cast %175 : vector<32xf32> to vector<32x1xf32>
    %cst_69 = arith.constant 3.200000e+01 : f32
    %177 = vector.broadcast %cst_69 : f32 to vector<32x1xf32>
    %178 = arith.divf %176, %177 : vector<32x1xf32>
    %179 = vector.broadcast %171 : vector<32x1xf32> to vector<32x32xf32>
    %180 = arith.subf %163, %179 : vector<32x32xf32>
    %cst_70 = arith.constant 9.99999974E-6 : f32
    %181 = vector.broadcast %cst_70 : f32 to vector<32x1xf32>
    %182 = arith.addf %178, %181 : vector<32x1xf32>
    %183 = math.rsqrt %182 : vector<32x1xf32>
    %184 = vector.broadcast %183 : vector<32x1xf32> to vector<32x32xf32>
    %185 = arith.mulf %180, %184 : vector<32x32xf32>
    %186 = vector.broadcast %165 : vector<1x32xf32> to vector<32x32xf32>
    %187 = arith.mulf %185, %186 : vector<32x32xf32>
    %188 = vector.broadcast %167 : vector<1x32xf32> to vector<32x32xf32>
    %189 = arith.addf %187, %188 : vector<32x32xf32>
    %190 = arith.truncf %189 : vector<32x32xf32> to vector<32x32xbf16>
    %c0_71 = arith.constant 0 : index
    %c0_72 = arith.constant 0 : index
    %c0_73 = arith.constant 0 : index
    %191 = vector.load %arg10[%c0_71, %c0_72, %c0_73] : memref<1x32x128xbf16, #tpu.memory_space<vmem>>, vector<1x32x128xbf16>
    %192 = vector.shape_cast %191 : vector<1x32x128xbf16> to vector<32x128xbf16>
    %cst_74 = arith.constant dense<0.000000e+00> : vector<32x128xf32>
    %193 = tpu.matmul %190, %192, %cst_74 {dimension_numbers = #tpu.dot_dimension_numbers<[1], [0], [0], [1], [0, 0, 1, 1], [], []>} : vector<32x32xbf16>, vector<32x128xbf16>, vector<32x128xf32> -> vector<32x128xf32>
    %c0_75 = arith.constant 0 : index
    %c0_76 = arith.constant 0 : index
    %c0_77 = arith.constant 0 : index
    %194 = vector.load %arg11[%c0_75, %c0_76, %c0_77] : memref<1x1x128xf32, #tpu.memory_space<vmem>>, vector<1x1x128xf32>
    %195 = vector.shape_cast %194 : vector<1x1x128xf32> to vector<1x128xf32>
    %196 = vector.broadcast %195 : vector<1x128xf32> to vector<32x128xf32>
    %197 = arith.addf %193, %196 : vector<32x128xf32>
    %198 = arith.mulf %197, %197 : vector<32x128xf32>
    %199 = arith.mulf %197, %198 : vector<32x128xf32>
    %cst_78 = arith.constant 4.471500e-02 : f32
    %200 = vector.broadcast %cst_78 : f32 to vector<32x128xf32>
    %201 = arith.mulf %200, %199 : vector<32x128xf32>
    %202 = arith.addf %197, %201 : vector<32x128xf32>
    %cst_79 = arith.constant 0.797884583 : f32
    %203 = vector.broadcast %cst_79 : f32 to vector<32x128xf32>
    %204 = arith.mulf %203, %202 : vector<32x128xf32>
    %205 = math.tanh %204 : vector<32x128xf32>
    %cst_80 = arith.constant 1.000000e+00 : f32
    %206 = vector.broadcast %cst_80 : f32 to vector<32x128xf32>
    %207 = arith.addf %206, %205 : vector<32x128xf32>
    %cst_81 = arith.constant 5.000000e-01 : f32
    %208 = vector.broadcast %cst_81 : f32 to vector<32x128xf32>
    %209 = arith.mulf %208, %207 : vector<32x128xf32>
    %210 = arith.mulf %197, %209 : vector<32x128xf32>
    %211 = arith.truncf %210 : vector<32x128xf32> to vector<32x128xbf16>
    %c0_82 = arith.constant 0 : index
    %c0_83 = arith.constant 0 : index
    %c0_84 = arith.constant 0 : index
    %212 = vector.load %arg12[%c0_82, %c0_83, %c0_84] : memref<1x128x32xbf16, #tpu.memory_space<vmem>>, vector<1x128x32xbf16>
    %213 = vector.shape_cast %212 : vector<1x128x32xbf16> to vector<128x32xbf16>
    %cst_85 = arith.constant dense<0.000000e+00> : vector<32x32xf32>
    %214 = tpu.matmul %211, %213, %cst_85 {dimension_numbers = #tpu.dot_dimension_numbers<[1], [0], [0], [1], [0, 0, 1, 1], [], []>} : vector<32x128xbf16>, vector<128x32xbf16>, vector<32x32xf32> -> vector<32x32xf32>
    %c0_86 = arith.constant 0 : index
    %c0_87 = arith.constant 0 : index
    %c0_88 = arith.constant 0 : index
    %215 = vector.load %arg13[%c0_86, %c0_87, %c0_88] : memref<1x1x32xf32, #tpu.memory_space<vmem>>, vector<1x1x32xf32>
    %216 = vector.shape_cast %215 : vector<1x1x32xf32> to vector<1x32xf32>
    %217 = vector.broadcast %216 : vector<1x32xf32> to vector<32x32xf32>
    %218 = arith.addf %214, %217 : vector<32x32xf32>
    %219 = arith.addf %4, %218 : vector<32x32xf32>
    %220 = vector.shape_cast %163 : vector<32x32xf32> to vector<2x16x32xf32>
    %c0_89 = arith.constant 0 : index
    %c0_90 = arith.constant 0 : index
    %c0_91 = arith.constant 0 : index
    %c0_92 = arith.constant 0 : index
    %221 = vector.load %arg16[%c0_89, %c0_90, %c0_91, %c0_92] : memref<1x2x16x64xf32, #tpu.memory_space<vmem>>, vector<1x2x16x32xf32>
    %222 = vector.shape_cast %221 : vector<1x2x16x32xf32> to vector<2x16x32xf32>
    %223 = vector.shape_cast %220 : vector<2x16x32xf32> to vector<1x2x16x32xf32>
    tpu.vector_store %arg16[%c0_89, %c0_90, %c0_91, %c0_92], %223 {strides = array<i32>} : memref<1x2x16x64xf32, #tpu.memory_space<vmem>>, vector<1x2x16x32xf32>,
    %224 = vector.shape_cast %219 : vector<32x32xf32> to vector<2x16x32xf32>
    %c0_93 = arith.constant 0 : index
    %c0_94 = arith.constant 0 : index
    %c0_95 = arith.constant 0 : index
    %c32 = arith.constant 32 : index
    %225 = vector.load %arg16[%c0_93, %c0_94, %c0_95, %c32] : memref<1x2x16x64xf32, #tpu.memory_space<vmem>>, vector<1x2x16x32xf32>
    %226 = vector.shape_cast %225 : vector<1x2x16x32xf32> to vector<2x16x32xf32>
    %227 = vector.shape_cast %224 : vector<2x16x32xf32> to vector<1x2x16x32xf32>
    tpu.vector_store %arg16[%c0_93, %c0_94, %c0_95, %c32], %227 {strides = array<i32>} : memref<1x2x16x64xf32, #tpu.memory_space<vmem>>, vector<1x2x16x32xf32>,
    return
  }
  func.func @transform_0(%arg0: i32) -> (i32, i32, i32, i32) {
    %c0_i32 = arith.constant 0 : i32
    %c0_i32_0 = arith.constant 0 : i32
    %c0_i32_1 = arith.constant 0 : i32
    %c0_i32_2 = arith.constant 0 : i32
    return %arg0, %c0_i32, %c0_i32_0, %c0_i32_1 : i32, i32, i32, i32
  }
  func.func @transform_1(%arg0: i32) -> (i32, i32, i32) {
    %c0_i32 = arith.constant 0 : i32
    %c0_i32_0 = arith.constant 0 : i32
    %c0_i32_1 = arith.constant 0 : i32
    %c0_i32_2 = arith.constant 0 : i32
    return %c0_i32, %c0_i32_0, %c0_i32_1 : i32, i32, i32
  }
  func.func @transform_2(%arg0: i32) -> (i32, i32, i32) {
    %c0_i32 = arith.constant 0 : i32
    %c0_i32_0 = arith.constant 0 : i32
    %c0_i32_1 = arith.constant 0 : i32
    %c0_i32_2 = arith.constant 0 : i32
    return %c0_i32, %c0_i32_0, %c0_i32_1 : i32, i32, i32
  }
  func.func @transform_3(%arg0: i32) -> (i32, i32, i32) {
    %c0_i32 = arith.constant 0 : i32
    %c0_i32_0 = arith.constant 0 : i32
    %c0_i32_1 = arith.constant 0 : i32
    return %arg0, %c0_i32, %c0_i32_0 : i32, i32, i32
  }
  func.func @transform_4(%arg0: i32) -> (i32, i32, i32) {
    %c0_i32 = arith.constant 0 : i32
    %c0_i32_0 = arith.constant 0 : i32
    %c0_i32_1 = arith.constant 0 : i32
    return %arg0, %c0_i32, %c0_i32_0 : i32, i32, i32
  }
  func.func @transform_5(%arg0: i32) -> (i32, i32, i32) {
    %c0_i32 = arith.constant 0 : i32
    %c0_i32_0 = arith.constant 0 : i32
    %c0_i32_1 = arith.constant 0 : i32
    return %arg0, %c0_i32, %c0_i32_0 : i32, i32, i32
  }
  func.func @transform_6(%arg0: i32) -> (i32, i32, i32) {
    %c0_i32 = arith.constant 0 : i32
    %c0_i32_0 = arith.constant 0 : i32
    %c0_i32_1 = arith.constant 0 : i32
    return %arg0, %c0_i32, %c0_i32_0 : i32, i32, i32
  }
  func.func @transform_7(%arg0: i32) -> (i32, i32, i32) {
    %c0_i32 = arith.constant 0 : i32
    %c0_i32_0 = arith.constant 0 : i32
    %c0_i32_1 = arith.constant 0 : i32
    return %arg0, %c0_i32, %c0_i32_0 : i32, i32, i32
  }
  func.func @transform_8(%arg0: i32) -> (i32, i32, i32) {
    %c0_i32 = arith.constant 0 : i32
    %c0_i32_0 = arith.constant 0 : i32
    %c0_i32_1 = arith.constant 0 : i32
    return %arg0, %c0_i32, %c0_i32_0 : i32, i32, i32
  }
  func.func @transform_9(%arg0: i32) -> (i32, i32, i32) {
    %c0_i32 = arith.constant 0 : i32
    %c0_i32_0 = arith.constant 0 : i32
    %c0_i32_1 = arith.constant 0 : i32
    return %arg0, %c0_i32, %c0_i32_0 : i32, i32, i32
  }
  func.func @transform_10(%arg0: i32) -> (i32, i32, i32) {
    %c0_i32 = arith.constant 0 : i32
    %c0_i32_0 = arith.constant 0 : i32
    %c0_i32_1 = arith.constant 0 : i32
    return %arg0, %c0_i32, %c0_i32_0 : i32, i32, i32
  }
  func.func @transform_11(%arg0: i32) -> (i32, i32, i32) {
    %c0_i32 = arith.constant 0 : i32
    %c0_i32_0 = arith.constant 0 : i32
    %c0_i32_1 = arith.constant 0 : i32
    return %arg0, %c0_i32, %c0_i32_0 : i32, i32, i32
  }
  func.func @transform_12(%arg0: i32) -> (i32, i32, i32) {
    %c0_i32 = arith.constant 0 : i32
    %c0_i32_0 = arith.constant 0 : i32
    %c0_i32_1 = arith.constant 0 : i32
    return %arg0, %c0_i32, %c0_i32_0 : i32, i32, i32
  }
  func.func @transform_13(%arg0: i32) -> (i32, i32, i32) {
    %c0_i32 = arith.constant 0 : i32
    %c0_i32_0 = arith.constant 0 : i32
    %c0_i32_1 = arith.constant 0 : i32
    return %arg0, %c0_i32, %c0_i32_0 : i32, i32, i32
  }
  func.func @transform_14(%arg0: i32) -> (i32, i32, i32) {
    %c0_i32 = arith.constant 0 : i32
    %c0_i32_0 = arith.constant 0 : i32
    %c0_i32_1 = arith.constant 0 : i32
    return %arg0, %c0_i32, %c0_i32_0 : i32, i32, i32
  }
  func.func @transform_15(%arg0: i32) -> (i32, i32, i32, i32) {
    %c0_i32 = arith.constant 0 : i32
    %c0_i32_0 = arith.constant 0 : i32
    %c0_i32_1 = arith.constant 0 : i32
    %c0_i32_2 = arith.constant 0 : i32
    return %arg0, %c0_i32, %c0_i32_0, %c0_i32_1 : i32, i32, i32, i32
  }
}

</mosaic_0001>

<llo_original>
// kernel: tpu_custom_call.1
$region0: #{tpu_custom_call.1}
  #allocation0 [shape = 'u32[]', space=smem, size = 0x4, offset = 0x4, fixed_abs, tag = 'smem constant byte address 0x4 - core index']
  #allocation1 [shape = 'u32[144,128]{1,0:T(1,128)}', space=vmem, size = 0x12000, scoped, tag = 'internal scratch']
  %s0 = inlined_call_operand.vmem [shape: f32[2,2,16,64], index: 0, kind: input, shape index: {}]
  %s1 = inlined_call_operand.hbm [shape: bf16[2,8,32], index: 1, kind: input, shape index: {}]
  %s2 = inlined_call_operand.vmem [shape: f32[2,1,8], index: 2, kind: input, shape index: {}]
  %s3 = inlined_call_operand.vmem [shape: bf16[2,32,32], index: 3, kind: input, shape index: {}]
  %s4 = inlined_call_operand.vmem [shape: bf16[2,32,64], index: 4, kind: input, shape index: {}]
  %s5 = inlined_call_operand.vmem [shape: bf16[2,32,32], index: 5, kind: input, shape index: {}]
  %s6 = inlined_call_operand.vmem [shape: f32[2,1,32], index: 6, kind: input, shape index: {}]
  %s7 = inlined_call_operand.vmem [shape: f32[2,1,32], index: 7, kind: input, shape index: {}]
  %s8 = inlined_call_operand.vmem [shape: f32[2,1,32], index: 8, kind: input, shape index: {}]
  %s9 = inlined_call_operand.hbm [shape: bf16[2,32,128], index: 9, kind: input, shape index: {}]
  %s10 = inlined_call_operand.vmem [shape: f32[2,1,128], index: 10, kind: input, shape index: {}]
  %s11 = inlined_call_operand.vmem [shape: bf16[2,128,32], index: 11, kind: input, shape index: {}]
  %s12 = inlined_call_operand.vmem [shape: f32[2,1,32], index: 12, kind: input, shape index: {}]
  %s13 = inlined_call_operand.vmem [shape: f32[2,1,32], index: 13, kind: input, shape index: {}]
  %s14 = inlined_call_operand.vmem [shape: f32[2,1,32], index: 14, kind: input, shape index: {}]
  %s15 = inlined_call_operand.hbm [shape: f32[2,2,16,64], index: 15, kind: output, shape index: {}]
  %s16 = sld [smem:[#allocation0]]
  $region101: #{tpu_custom_call.1} parent=0
    _
  %s18 = ssub.s32 1, %s16
  %s19 = scalar_select 0, %s18, %s16
  $region1: #{tpu_custom_call.1} parent=0
    #allocation2 [shape = 'u8[4096]{0}', space=vmem, size = 0x1000, scoped, tag = 'input window, operand 1, single buffered']
    #allocation3 [shape = 's32[2]{0}', space=sflag, size = 0x8, scoped, tag = 'scoped memory for tpu_custom_call.1']
    #allocation4 [shape = 's32[2]{0}', space=sflag, size = 0x8, scoped, tag = 'scoped memory for tpu_custom_call.1']
    #allocation5 [shape = 'u8[16384]{0}', space=vmem, size = 0x4000, scoped, tag = 'input window, operand 9']
    #allocation6 [shape = 's32[2]{0}', space=sflag, size = 0x8, scoped, tag = 'scoped memory for tpu_custom_call.1']
    #allocation7 [shape = 'u8[32768]{0}', space=vmem, size = 0x8000, scoped, tag = 'output window, operand 0']
    %20 = vsyncpa [#allocation3], 0
    %21 = vsyncpa [#allocation6], 0
    %s22 = scalar_lea.sflag [#allocation6], 1
    %23 = vsyncpa %s22, 0
    %24 = vsyncpa [#allocation4], 0
    %s25 = scalar_lea.sflag [#allocation4], 1
    %26 = vsyncpa %s25, 0
    loop: start=0, step=1, limit=4
    $region2: #{tpu_custom_call.1} parent=1 // loop_pre_header
      _
    $region3: #{tpu_custom_call.1} parent=1 // loop_header
      %s28 = sphi 0, %s32
      %p29 = scmp.ge.s32.totalorder %s28, 4
      %s38 = sphi 0, %s40
      %s41 = sphi 0, %s38
      %s42 = sphi 0, %s41
      %s58 = sphi 0, %s42
      %s62 = sphi 0, %s62
      %s64 = sphi 0, %s62
      %s65 = sphi 0, %s64
      %s79 = sphi 0, %s65
      %s83 = sphi 0, %s83
      %s85 = sphi 0, %s83
      %s86 = sphi 0, %s85
      %s100 = sphi 0, %s86
      %s106 = sphi 0, %s108
      %s109 = sphi 0, %s106
      %s110 = sphi 0, %s109
      %s126 = sphi 0, %s110
      %s132 = sphi 0, %s134
      %s135 = sphi 0, %s132
      %s136 = sphi 0, %s135
      %s152 = sphi 0, %s136
      %s158 = sphi 0, %s160
      %s161 = sphi 0, %s158
      %s162 = sphi 0, %s161
      %s178 = sphi 0, %s162
      %s184 = sphi 0, %s186
      %s187 = sphi 0, %s184
      %s188 = sphi 0, %s187
      %s204 = sphi 0, %s188
      %s210 = sphi 0, %s212
      %s213 = sphi 0, %s210
      %s214 = sphi 0, %s213
      %s230 = sphi 0, %s214
      %s236 = sphi 0, %s238
      %s239 = sphi 0, %s236
      %s240 = sphi 0, %s239
      %s256 = sphi 0, %s240
      %s262 = sphi 0, %s264
      %s265 = sphi 0, %s262
      %s266 = sphi 0, %s265
      %s282 = sphi 0, %s266
      %s288 = sphi 0, %s290
      %s291 = sphi 0, %s288
      %s292 = sphi 0, %s291
      %s308 = sphi 0, %s292
      %s314 = sphi 0, %s316
      %s317 = sphi 0, %s314
      %s318 = sphi 0, %s317
      %s334 = sphi 0, %s318
      %s340 = sphi 0, %s342
      %s343 = sphi 0, %s340
      %s344 = sphi 0, %s343
      %s360 = sphi 0, %s344
      %s366 = sphi 0, %s368
      %s369 = sphi 0, %s366
      %s370 = sphi 0, %s369
      %s386 = sphi 0, %s370
      %s392 = sphi 0, %s394
      %s395 = sphi 0, %s392
      %s396 = sphi 0, %s395
      %s412 = sphi 0, %s396
      %s418 = sphi 0, %s420
      %s421 = sphi 0, %s418
      %s422 = sphi 0, %s421
      %s438 = sphi 0, %s422
    $region4: #{tpu_custom_call.1} parent=1 // loop_header_branch
      %31 = sbr.rel (%p29) target = $region8
    $region5: #{tpu_custom_call.1} parent=1 // loop_body
      %s33 = ssub.s32 %s28, 1
      %s34 = ssub.s32 %s28, 2
      %s35 = sadd.s32 %s28, 1
      %s36 = ssub.s32 %s28, %s35
      %p37 = scmp.eq.s32.totalorder %s36, 0
      %s39 = sadd.s32 %s38, 1
      %s40 = scalar_select %p37, %s38, %s39
      %p43 = pneg %p37
      %p44 = scmp.eq.s32.totalorder %s28, 1
      %p45 = por %p43, %p44
      %p46 = scmp.ne.s32.totalorder %s38, %s41
      %p47 = scmp.eq.s32.totalorder %s28, 0
      %p48 = por %p46, %p47
      %p49 = scmp.ne.s32.totalorder %s38, %s41
      %p50 = scmp.eq.s32.totalorder %s33, 1
      %p51 = por %p49, %p50
      %p52 = scmp.ne.s32.totalorder %s41, %s42
      %p53 = scmp.eq.s32.totalorder %s33, 0
      %p54 = por %p52, %p53
      %p55 = scmp.ne.s32.totalorder %s41, %s42
      %p56 = scmp.eq.s32.totalorder %s34, 1
      %p57 = por %p55, %p56
      %p59 = scmp.ne.s32.totalorder %s42, %s58
      %p60 = scmp.eq.s32.totalorder %s34, 0
      %p61 = por %p59, %p60
      %s63 = sadd.s32 %s62, 1
      %p66 = scmp.eq.s32.totalorder %s28, 1
      %p67 = scmp.ne.s32.totalorder %s62, %s64
      %p68 = scmp.eq.s32.totalorder %s28, 0
      %p69 = por %p67, %p68
      %p70 = scmp.ne.s32.totalorder %s62, %s64
      %p71 = scmp.eq.s32.totalorder %s33, 1
      %p72 = por %p70, %p71
      %p73 = scmp.ne.s32.totalorder %s64, %s65
      %p74 = scmp.eq.s32.totalorder %s33, 0
      %p75 = por %p73, %p74
      %p76 = scmp.ne.s32.totalorder %s64, %s65
      %p77 = scmp.eq.s32.totalorder %s34, 1
      %p78 = por %p76, %p77
      %p80 = scmp.ne.s32.totalorder %s65, %s79
      %p81 = scmp.eq.s32.totalorder %s34, 0
      %p82 = por %p80, %p81
      %s84 = sadd.s32 %s83, 1
      %p87 = scmp.eq.s32.totalorder %s28, 1
      %p88 = scmp.ne.s32.totalorder %s83, %s85
      %p89 = scmp.eq.s32.totalorder %s28, 0
      %p90 = por %p88, %p89
      %p91 = scmp.ne.s32.totalorder %s83, %s85
      %p92 = scmp.eq.s32.totalorder %s33, 1
      %p93 = por %p91, %p92
      %p94 = scmp.ne.s32.totalorder %s85, %s86
      %p95 = scmp.eq.s32.totalorder %s33, 0
      %p96 = por %p94, %p95
      %p97 = scmp.ne.s32.totalorder %s85, %s86
      %p98 = scmp.eq.s32.totalorder %s34, 1
      %p99 = por %p97, %p98
      %p101 = scmp.ne.s32.totalorder %s86, %s100
      %p102 = scmp.eq.s32.totalorder %s34, 0
      %p103 = por %p101, %p102
      %s104 = ssub.s32 %s28, %s35
      %p105 = scmp.eq.s32.totalorder %s104, 0
      %s107 = sadd.s32 %s106, 1
      %s108 = scalar_select %p105, %s106, %s107
      %p111 = pneg %p105
      %p112 = scmp.eq.s32.totalorder %s28, 1
      %p113 = por %p111, %p112
      %p114 = scmp.ne.s32.totalorder %s106, %s109
      %p115 = scmp.eq.s32.totalorder %s28, 0
      %p116 = por %p114, %p115
      %p117 = scmp.ne.s32.totalorder %s106, %s109
      %p118 = scmp.eq.s32.totalorder %s33, 1
      %p119 = por %p117, %p118
      %p120 = scmp.ne.s32.totalorder %s109, %s110
      %p121 = scmp.eq.s32.totalorder %s33, 0
      %p122 = por %p120, %p121
      %p123 = scmp.ne.s32.totalorder %s109, %s110
      %p124 = scmp.eq.s32.totalorder %s34, 1
      %p125 = por %p123, %p124
      %p127 = scmp.ne.s32.totalorder %s110, %s126
      %p128 = scmp.eq.s32.totalorder %s34, 0
      %p129 = por %p127, %p128
      %s130 = ssub.s32 %s28, %s35
      %p131 = scmp.eq.s32.totalorder %s130, 0
      %s133 = sadd.s32 %s132, 1
      %s134 = scalar_select %p131, %s132, %s133
      %p137 = pneg %p131
      %p138 = scmp.eq.s32.totalorder %s28, 1
      %p139 = por %p137, %p138
      %p140 = scmp.ne.s32.totalorder %s132, %s135
      %p141 = scmp.eq.s32.totalorder %s28, 0
      %p142 = por %p140, %p141
      %p143 = scmp.ne.s32.totalorder %s132, %s135
      %p144 = scmp.eq.s32.totalorder %s33, 1
      %p145 = por %p143, %p144
      %p146 = scmp.ne.s32.totalorder %s135, %s136
      %p147 = scmp.eq.s32.totalorder %s33, 0
      %p148 = por %p146, %p147
      %p149 = scmp.ne.s32.totalorder %s135, %s136
      %p150 = scmp.eq.s32.totalorder %s34, 1
      %p151 = por %p149, %p150
      %p153 = scmp.ne.s32.totalorder %s136, %s152
      %p154 = scmp.eq.s32.totalorder %s34, 0
      %p155 = por %p153, %p154
      %s156 = ssub.s32 %s28, %s35
      %p157 = scmp.eq.s32.totalorder %s156, 0
      %s159 = sadd.s32 %s158, 1
      %s160 = scalar_select %p157, %s158, %s159
      %p163 = pneg %p157
      %p164 = scmp.eq.s32.totalorder %s28, 1
      %p165 = por %p163, %p164
      %p166 = scmp.ne.s32.totalorder %s158, %s161
      %p167 = scmp.eq.s32.totalorder %s28, 0
      %p168 = por %p166, %p167
      %p169 = scmp.ne.s32.totalorder %s158, %s161
      %p170 = scmp.eq.s32.totalorder %s33, 1
      %p171 = por %p169, %p170
      %p172 = scmp.ne.s32.totalorder %s161, %s162
      %p173 = scmp.eq.s32.totalorder %s33, 0
      %p174 = por %p172, %p173
      %p175 = scmp.ne.s32.totalorder %s161, %s162
      %p176 = scmp.eq.s32.totalorder %s34, 1
      %p177 = por %p175, %p176
      %p179 = scmp.ne.s32.totalorder %s162, %s178
      %p180 = scmp.eq.s32.totalorder %s34, 0
      %p181 = por %p179, %p180
      %s182 = ssub.s32 %s28, %s35
      %p183 = scmp.eq.s32.totalorder %s182, 0
      %s185 = sadd.s32 %s184, 1
      %s186 = scalar_select %p183, %s184, %s185
      %p189 = pneg %p183
      %p190 = scmp.eq.s32.totalorder %s28, 1
      %p191 = por %p189, %p190
      %p192 = scmp.ne.s32.totalorder %s184, %s187
      %p193 = scmp.eq.s32.totalorder %s28, 0
      %p194 = por %p192, %p193
      %p195 = scmp.ne.s32.totalorder %s184, %s187
      %p196 = scmp.eq.s32.totalorder %s33, 1
      %p197 = por %p195, %p196
      %p198 = scmp.ne.s32.totalorder %s187, %s188
      %p199 = scmp.eq.s32.totalorder %s33, 0
      %p200 = por %p198, %p199
      %p201 = scmp.ne.s32.totalorder %s187, %s188
      %p202 = scmp.eq.s32.totalorder %s34, 1
      %p203 = por %p201, %p202
      %p205 = scmp.ne.s32.totalorder %s188, %s204
      %p206 = scmp.eq.s32.totalorder %s34, 0
      %p207 = por %p205, %p206
      %s208 = ssub.s32 %s28, %s35
      %p209 = scmp.eq.s32.totalorder %s208, 0
      %s211 = sadd.s32 %s210, 1
      %s212 = scalar_select %p209, %s210, %s211
      %p215 = pneg %p209
      %p216 = scmp.eq.s32.totalorder %s28, 1
      %p217 = por %p215, %p216
      %p218 = scmp.ne.s32.totalorder %s210, %s213
      %p219 = scmp.eq.s32.totalorder %s28, 0
      %p220 = por %p218, %p219
      %p221 = scmp.ne.s32.totalorder %s210, %s213
      %p222 = scmp.eq.s32.totalorder %s33, 1
      %p223 = por %p221, %p222
      %p224 = scmp.ne.s32.totalorder %s213, %s214
      %p225 = scmp.eq.s32.totalorder %s33, 0
      %p226 = por %p224, %p225
      %p227 = scmp.ne.s32.totalorder %s213, %s214
      %p228 = scmp.eq.s32.totalorder %s34, 1
      %p229 = por %p227, %p228
      %p231 = scmp.ne.s32.totalorder %s214, %s230
      %p232 = scmp.eq.s32.totalorder %s34, 0
      %p233 = por %p231, %p232
      %s234 = ssub.s32 %s28, %s35
      %p235 = scmp.eq.s32.totalorder %s234, 0
      %s237 = sadd.s32 %s236, 1
      %s238 = scalar_select %p235, %s236, %s237
      %p241 = pneg %p235
      %p242 = scmp.eq.s32.totalorder %s28, 1
      %p243 = por %p241, %p242
      %p244 = scmp.ne.s32.totalorder %s236, %s239
      %p245 = scmp.eq.s32.totalorder %s28, 0
      %p246 = por %p244, %p245
      %p247 = scmp.ne.s32.totalorder %s236, %s239
      %p248 = scmp.eq.s32.totalorder %s33, 1
      %p249 = por %p247, %p248
      %p250 = scmp.ne.s32.totalorder %s239, %s240
      %p251 = scmp.eq.s32.totalorder %s33, 0
      %p252 = por %p250, %p251
      %p253 = scmp.ne.s32.totalorder %s239, %s240
      %p254 = scmp.eq.s32.totalorder %s34, 1
      %p255 = por %p253, %p254
      %p257 = scmp.ne.s32.totalorder %s240, %s256
      %p258 = scmp.eq.s32.totalorder %s34, 0
      %p259 = por %p257, %p258
      %s260 = ssub.s32 %s28, %s35
      %p261 = scmp.eq.s32.totalorder %s260, 0
      %s263 = sadd.s32 %s262, 1
      %s264 = scalar_select %p261, %s262, %s263
      %p267 = pneg %p261
      %p268 = scmp.eq.s32.totalorder %s28, 1
      %p269 = por %p267, %p268
      %p270 = scmp.ne.s32.totalorder %s262, %s265
      %p271 = scmp.eq.s32.totalorder %s28, 0
      %p272 = por %p270, %p271
      %p273 = scmp.ne.s32.totalorder %s262, %s265
      %p274 = scmp.eq.s32.totalorder %s33, 1
      %p275 = por %p273, %p274
      %p276 = scmp.ne.s32.totalorder %s265, %s266
      %p277 = scmp.eq.s32.totalorder %s33, 0
      %p278 = por %p276, %p277
      %p279 = scmp.ne.s32.totalorder %s265, %s266
      %p280 = scmp.eq.s32.totalorder %s34, 1
      %p281 = por %p279, %p280
      %p283 = scmp.ne.s32.totalorder %s266, %s282
      %p284 = scmp.eq.s32.totalorder %s34, 0
      %p285 = por %p283, %p284
      %s286 = ssub.s32 %s28, %s35
      %p287 = scmp.eq.s32.totalorder %s286, 0
      %s289 = sadd.s32 %s288, 1
      %s290 = scalar_select %p287, %s288, %s289
      %p293 = pneg %p287
      %p294 = scmp.eq.s32.totalorder %s28, 1
      %p295 = por %p293, %p294
      %p296 = scmp.ne.s32.totalorder %s288, %s291
      %p297 = scmp.eq.s32.totalorder %s28, 0
      %p298 = por %p296, %p297
      %p299 = scmp.ne.s32.totalorder %s288, %s291
      %p300 = scmp.eq.s32.totalorder %s33, 1
      %p301 = por %p299, %p300
      %p302 = scmp.ne.s32.totalorder %s291, %s292
      %p303 = scmp.eq.s32.totalorder %s33, 0
      %p304 = por %p302, %p303
      %p305 = scmp.ne.s32.totalorder %s291, %s292
      %p306 = scmp.eq.s32.totalorder %s34, 1
      %p307 = por %p305, %p306
      %p309 = scmp.ne.s32.totalorder %s292, %s308
      %p310 = scmp.eq.s32.totalorder %s34, 0
      %p311 = por %p309, %p310
      %s312 = ssub.s32 %s28, %s35
      %p313 = scmp.eq.s32.totalorder %s312, 0
      %s315 = sadd.s32 %s314, 1
      %s316 = scalar_select %p313, %s314, %s315
      %p319 = pneg %p313
      %p320 = scmp.eq.s32.totalorder %s28, 1
      %p321 = por %p319, %p320
      %p322 = scmp.ne.s32.totalorder %s314, %s317
      %p323 = scmp.eq.s32.totalorder %s28, 0
      %p324 = por %p322, %p323
      %p325 = scmp.ne.s32.totalorder %s314, %s317
      %p326 = scmp.eq.s32.totalorder %s33, 1
      %p327 = por %p325, %p326
      %p328 = scmp.ne.s32.totalorder %s317, %s318
      %p329 = scmp.eq.s32.totalorder %s33, 0
      %p330 = por %p328, %p329
      %p331 = scmp.ne.s32.totalorder %s317, %s318
      %p332 = scmp.eq.s32.totalorder %s34, 1
      %p333 = por %p331, %p332
      %p335 = scmp.ne.s32.totalorder %s318, %s334
      %p336 = scmp.eq.s32.totalorder %s34, 0
      %p337 = por %p335, %p336
      %s338 = ssub.s32 %s28, %s35
      %p339 = scmp.eq.s32.totalorder %s338, 0
      %s341 = sadd.s32 %s340, 1
      %s342 = scalar_select %p339, %s340, %s341
      %p345 = pneg %p339
      %p346 = scmp.eq.s32.totalorder %s28, 1
      %p347 = por %p345, %p346
      %p348 = scmp.ne.s32.totalorder %s340, %s343
      %p349 = scmp.eq.s32.totalorder %s28, 0
      %p350 = por %p348, %p349
      %p351 = scmp.ne.s32.totalorder %s340, %s343
      %p352 = scmp.eq.s32.totalorder %s33, 1
      %p353 = por %p351, %p352
      %p354 = scmp.ne.s32.totalorder %s343, %s344
      %p355 = scmp.eq.s32.totalorder %s33, 0
      %p356 = por %p354, %p355
      %p357 = scmp.ne.s32.totalorder %s343, %s344
      %p358 = scmp.eq.s32.totalorder %s34, 1
      %p359 = por %p357, %p358
      %p361 = scmp.ne.s32.totalorder %s344, %s360
      %p362 = scmp.eq.s32.totalorder %s34, 0
      %p363 = por %p361, %p362
      %s364 = ssub.s32 %s28, %s35
      %p365 = scmp.eq.s32.totalorder %s364, 0
      %s367 = sadd.s32 %s366, 1
      %s368 = scalar_select %p365, %s366, %s367
      %p371 = pneg %p365
      %p372 = scmp.eq.s32.totalorder %s28, 1
      %p373 = por %p371, %p372
      %p374 = scmp.ne.s32.totalorder %s366, %s369
      %p375 = scmp.eq.s32.totalorder %s28, 0
      %p376 = por %p374, %p375
      %p377 = scmp.ne.s32.totalorder %s366, %s369
      %p378 = scmp.eq.s32.totalorder %s33, 1
      %p379 = por %p377, %p378
      %p380 = scmp.ne.s32.totalorder %s369, %s370
      %p381 = scmp.eq.s32.totalorder %s33, 0
      %p382 = por %p380, %p381
      %p383 = scmp.ne.s32.totalorder %s369, %s370
      %p384 = scmp.eq.s32.totalorder %s34, 1
      %p385 = por %p383, %p384
      %p387 = scmp.ne.s32.totalorder %s370, %s386
      %p388 = scmp.eq.s32.totalorder %s34, 0
      %p389 = por %p387, %p388
      %s390 = ssub.s32 %s28, %s35
      %p391 = scmp.eq.s32.totalorder %s390, 0
      %s393 = sadd.s32 %s392, 1
      %s394 = scalar_select %p391, %s392, %s393
      %p397 = pneg %p391
      %p398 = scmp.eq.s32.totalorder %s28, 1
      %p399 = por %p397, %p398
      %p400 = scmp.ne.s32.totalorder %s392, %s395
      %p401 = scmp.eq.s32.totalorder %s28, 0
      %p402 = por %p400, %p401
      %p403 = scmp.ne.s32.totalorder %s392, %s395
      %p404 = scmp.eq.s32.totalorder %s33, 1
      %p405 = por %p403, %p404
      %p406 = scmp.ne.s32.totalorder %s395, %s396
      %p407 = scmp.eq.s32.totalorder %s33, 0
      %p408 = por %p406, %p407
      %p409 = scmp.ne.s32.totalorder %s395, %s396
      %p410 = scmp.eq.s32.totalorder %s34, 1
      %p411 = por %p409, %p410
      %p413 = scmp.ne.s32.totalorder %s396, %s412
      %p414 = scmp.eq.s32.totalorder %s34, 0
      %p415 = por %p413, %p414
      %s416 = ssub.s32 %s28, %s35
      %p417 = scmp.eq.s32.totalorder %s416, 0
      %s419 = sadd.s32 %s418, 1
      %s420 = scalar_select %p417, %s418, %s419
      %p423 = pneg %p417
      %p424 = scmp.eq.s32.totalorder %s28, 1
      %p425 = por %p423, %p424
      %p426 = scmp.ne.s32.totalorder %s418, %s421
      %p427 = scmp.eq.s32.totalorder %s28, 0
      %p428 = por %p426, %p427
      %p429 = scmp.ne.s32.totalorder %s418, %s421
      %p430 = scmp.eq.s32.totalorder %s33, 1
      %p431 = por %p429, %p430
      %p432 = scmp.ne.s32.totalorder %s421, %s422
      %p433 = scmp.eq.s32.totalorder %s33, 0
      %p434 = por %p432, %p433
      %p435 = scmp.ne.s32.totalorder %s421, %s422
      %p436 = scmp.eq.s32.totalorder %s34, 1
      %p437 = por %p435, %p436
      %p439 = scmp.ne.s32.totalorder %s422, %s438
      %p440 = scmp.eq.s32.totalorder %s34, 0
      %p441 = por %p439, %p440
      %p442 = scmp.le.s32.totalorder 1, %s28
      %p443 = scmp.lt.s32.totalorder %s28, 3
      %p444 = pnand %p442, %p443
      %p445 = pneg %p444
      // Predicated region
      $region9: #{tpu_custom_call.1} parent=5 // pred_check
        _
      $region10: #{tpu_custom_call.1} parent=5 // pred_check_branch
        %447 = sbr.rel (%p444) target = $region12
      $region11: #{tpu_custom_call.1} parent=5 // pred_region
        %s448 = ssub.s32 %s28, 1
        // Predicated region
        $region13: #{tpu_custom_call.1} parent=11 // pred_check
          %p449 = pneg %p75
        $region14: #{tpu_custom_call.1} parent=11 // pred_check_branch
          %451 = sbr.rel (%p449) target = $region16
        $region15: #{tpu_custom_call.1} parent=11 // pred_region
          %s453 = ssub.s32 128, 128
          %454 = vsyncadd [#allocation3], %s453
          %s455 = sshll.u32 [#allocation2], 4
          %s456 = int_to_ptr.vmem [resolvable:$true] %s455
          %461 = dma.hbm_to_vmem [thread:$0]  %s1, 128, %s456, [#allocation3], 64, 64, 4
        $region16: #{tpu_custom_call.1} parent=11 // pred_fallthru
          _
        // Predicated region
        $region17: #{tpu_custom_call.1} parent=11 // pred_check
          %p462 = pneg %p96
        $region18: #{tpu_custom_call.1} parent=11 // pred_check_branch
          %464 = sbr.rel (%p462) target = $region20
        $region19: #{tpu_custom_call.1} parent=11 // pred_region
          _
        $region20: #{tpu_custom_call.1} parent=11 // pred_fallthru
          _
      $region12: #{tpu_custom_call.1} parent=5 // pred_fallthru
        _
      %p465 = scmp.lt.s32.totalorder %s28, 2
      // Predicated region
      $region21: #{tpu_custom_call.1} parent=5 // pred_check
        %p466 = pneg %p465
      $region22: #{tpu_custom_call.1} parent=5 // pred_check_branch
        %468 = sbr.rel (%p466) target = $region24
      $region23: #{tpu_custom_call.1} parent=5 // pred_region
        // Predicated region
        $region25: #{tpu_custom_call.1} parent=23 // pred_check
          %p469 = pneg %p48
        $region26: #{tpu_custom_call.1} parent=23 // pred_check_branch
          %471 = sbr.rel (%p469) target = $region28
        $region27: #{tpu_custom_call.1} parent=23 // pred_region
          %p472 = scmp.lt.s32.totalorder %s28, 1
          %s473 = scalar_select %p472, %s28, 1
          %s474 = smul.addr %s473, 4
          %s475 = smul.addr %s474, 8
          %s476 = scalar_lea.vmem %s0, %s475
        $region28: #{tpu_custom_call.1} parent=23 // pred_fallthru
          _
        // Predicated region
        $region29: #{tpu_custom_call.1} parent=23 // pred_check
          %p477 = pneg %p116
        $region30: #{tpu_custom_call.1} parent=23 // pred_check_branch
          %479 = sbr.rel (%p477) target = $region32
        $region31: #{tpu_custom_call.1} parent=23 // pred_region
          %p480 = scmp.lt.s32.totalorder %s28, 1
          %s481 = scalar_select %p480, %s28, 1
          %s482 = smul.addr %s481, 4
          %s483 = smul.addr %s482, 4
          %s484 = scalar_lea.vmem %s3, %s483
        $region32: #{tpu_custom_call.1} parent=23 // pred_fallthru
          _
        // Predicated region
        $region33: #{tpu_custom_call.1} parent=23 // pred_check
          %p485 = pneg %p142
        $region34: #{tpu_custom_call.1} parent=23 // pred_check_branch
          %487 = sbr.rel (%p485) target = $region36
        $region35: #{tpu_custom_call.1} parent=23 // pred_region
          %p488 = scmp.lt.s32.totalorder %s28, 1
          %s489 = scalar_select %p488, %s28, 1
          %s490 = smul.addr %s489, 4
          %s491 = smul.addr %s490, 4
          %s492 = scalar_lea.vmem %s4, %s491
        $region36: #{tpu_custom_call.1} parent=23 // pred_fallthru
          _
        // Predicated region
        $region37: #{tpu_custom_call.1} parent=23 // pred_check
          %p493 = pneg %p168
        $region38: #{tpu_custom_call.1} parent=23 // pred_check_branch
          %495 = sbr.rel (%p493) target = $region40
        $region39: #{tpu_custom_call.1} parent=23 // pred_region
          %p496 = scmp.lt.s32.totalorder %s28, 1
          %s497 = scalar_select %p496, %s28, 1
          %s498 = smul.addr %s497, 4
          %s499 = smul.addr %s498, 4
          %s500 = scalar_lea.vmem %s5, %s499
        $region40: #{tpu_custom_call.1} parent=23 // pred_fallthru
          _
        // Predicated region
        $region41: #{tpu_custom_call.1} parent=23 // pred_check
          %p501 = pneg %p194
        $region42: #{tpu_custom_call.1} parent=23 // pred_check_branch
          %503 = sbr.rel (%p501) target = $region44
        $region43: #{tpu_custom_call.1} parent=23 // pred_region
          %p504 = scmp.lt.s32.totalorder %s28, 1
          %s505 = scalar_select %p504, %s28, 1
          %s506 = scalar_lea.vmem %s6, %s505
        $region44: #{tpu_custom_call.1} parent=23 // pred_fallthru
          _
        // Predicated region
        $region45: #{tpu_custom_call.1} parent=23 // pred_check
          %p507 = pneg %p220
        $region46: #{tpu_custom_call.1} parent=23 // pred_check_branch
          %509 = sbr.rel (%p507) target = $region48
        $region47: #{tpu_custom_call.1} parent=23 // pred_region
          %p510 = scmp.lt.s32.totalorder %s28, 1
          %s511 = scalar_select %p510, %s28, 1
          %s512 = scalar_lea.vmem %s7, %s511
        $region48: #{tpu_custom_call.1} parent=23 // pred_fallthru
          _
        // Predicated region
        $region49: #{tpu_custom_call.1} parent=23 // pred_check
          %p513 = pneg %p246
        $region50: #{tpu_custom_call.1} parent=23 // pred_check_branch
          %515 = sbr.rel (%p513) target = $region52
        $region51: #{tpu_custom_call.1} parent=23 // pred_region
          %p516 = scmp.lt.s32.totalorder %s28, 1
          %s517 = scalar_select %p516, %s28, 1
          %s518 = scalar_lea.vmem %s8, %s517
        $region52: #{tpu_custom_call.1} parent=23 // pred_fallthru
          _
        // Predicated region
        $region53: #{tpu_custom_call.1} parent=23 // pred_check
          %p519 = pneg %p272
        $region54: #{tpu_custom_call.1} parent=23 // pred_check_branch
          %521 = sbr.rel (%p519) target = $region56
        $region55: #{tpu_custom_call.1} parent=23 // pred_region
          %s522 = sand.u32 %s262, 1
          %s523 = scalar_lea.sflag [#allocation6], %s522
          %s524 = sand.u32 %s262, 1
          %s525 = smul.addr %s524, 16
          %s526 = scalar_lea.vmem [#allocation5], %s525
          %s528 = ssub.s32 256, 256
          %529 = vsyncadd %s523, %s528
          %s530 = smul.addr %s28, 4
          %s531 = smul.addr %s530, 64
          %s532 = scalar_lea.hbm %s9, %s531
          %s533 = sshll.u32 %s526, 4
          %s534 = int_to_ptr.vmem [resolvable:$true] %s533
          %539 = dma.hbm_to_vmem [thread:$0]  %s532, 256, %s534, %s523, 64, 64, 4
        $region56: #{tpu_custom_call.1} parent=23 // pred_fallthru
          _
        // Predicated region
        $region57: #{tpu_custom_call.1} parent=23 // pred_check
          %p540 = pneg %p298
        $region58: #{tpu_custom_call.1} parent=23 // pred_check_branch
          %542 = sbr.rel (%p540) target = $region60
        $region59: #{tpu_custom_call.1} parent=23 // pred_region
          %p543 = scmp.lt.s32.totalorder %s28, 1
          %s544 = scalar_select %p543, %s28, 1
          %s545 = scalar_lea.vmem %s10, %s544
        $region60: #{tpu_custom_call.1} parent=23 // pred_fallthru
          _
        // Predicated region
        $region61: #{tpu_custom_call.1} parent=23 // pred_check
          %p546 = pneg %p324
        $region62: #{tpu_custom_call.1} parent=23 // pred_check_branch
          %548 = sbr.rel (%p546) target = $region64
        $region63: #{tpu_custom_call.1} parent=23 // pred_region
          %p549 = scmp.lt.s32.totalorder %s28, 1
          %s550 = scalar_select %p549, %s28, 1
          %s551 = smul.addr %s550, 16
          %s552 = smul.addr %s551, 4
          %s553 = scalar_lea.vmem %s11, %s552
        $region64: #{tpu_custom_call.1} parent=23 // pred_fallthru
          _
        // Predicated region
        $region65: #{tpu_custom_call.1} parent=23 // pred_check
          %p554 = pneg %p350
        $region66: #{tpu_custom_call.1} parent=23 // pred_check_branch
          %556 = sbr.rel (%p554) target = $region68
        $region67: #{tpu_custom_call.1} parent=23 // pred_region
          %p557 = scmp.lt.s32.totalorder %s28, 1
          %s558 = scalar_select %p557, %s28, 1
          %s559 = scalar_lea.vmem %s12, %s558
        $region68: #{tpu_custom_call.1} parent=23 // pred_fallthru
          _
        // Predicated region
        $region69: #{tpu_custom_call.1} parent=23 // pred_check
          %p560 = pneg %p376
        $region70: #{tpu_custom_call.1} parent=23 // pred_check_branch
          %562 = sbr.rel (%p560) target = $region72
        $region71: #{tpu_custom_call.1} parent=23 // pred_region
          %p563 = scmp.lt.s32.totalorder %s28, 1
          %s564 = scalar_select %p563, %s28, 1
          %s565 = scalar_lea.vmem %s13, %s564
        $region72: #{tpu_custom_call.1} parent=23 // pred_fallthru
          _
        // Predicated region
        $region73: #{tpu_custom_call.1} parent=23 // pred_check
          %p566 = pneg %p402
        $region74: #{tpu_custom_call.1} parent=23 // pred_check_branch
          %568 = sbr.rel (%p566) target = $region76
        $region75: #{tpu_custom_call.1} parent=23 // pred_region
          %p569 = scmp.lt.s32.totalorder %s28, 1
          %s570 = scalar_select %p569, %s28, 1
          %s571 = scalar_lea.vmem %s14, %s570
        $region76: #{tpu_custom_call.1} parent=23 // pred_fallthru
          _
      $region24: #{tpu_custom_call.1} parent=5 // pred_fallthru
        _
      %p572 = scmp.le.s32.totalorder 1, %s28
      %p573 = scmp.lt.s32.totalorder %s28, 3
      %p574 = pnand %p572, %p573
      %p575 = pneg %p574
      // Predicated region
      $region77: #{tpu_custom_call.1} parent=5 // pred_check
        _
      $region78: #{tpu_custom_call.1} parent=5 // pred_check_branch
        %577 = sbr.rel (%p574) target = $region80
      $region79: #{tpu_custom_call.1} parent=5 // pred_region
        %s578 = ssub.s32 %s28, 1
        // Predicated region
        $region81: #{tpu_custom_call.1} parent=79 // pred_check
          %p579 = pneg %p75
        $region82: #{tpu_custom_call.1} parent=79 // pred_check_branch
          %581 = sbr.rel (%p579) target = $region84
        $region83: #{tpu_custom_call.1} parent=79 // pred_region
          %582 = dma.done [#allocation3], 128
        $region84: #{tpu_custom_call.1} parent=79 // pred_fallthru
          _
        %s583 = sand.u32 %s265, 1
        %s584 = scalar_lea.sflag [#allocation6], %s583
        %s585 = sand.u32 %s265, 1
        %s586 = smul.addr %s585, 16
        %s587 = scalar_lea.vmem [#allocation5], %s586
        // Predicated region
        $region85: #{tpu_custom_call.1} parent=79 // pred_check
          %p588 = pneg %p278
        $region86: #{tpu_custom_call.1} parent=79 // pred_check_branch
          %590 = sbr.rel (%p588) target = $region88
        $region87: #{tpu_custom_call.1} parent=79 // pred_region
          %591 = dma.done %s584, 256
        $region88: #{tpu_custom_call.1} parent=79 // pred_fallthru
          _
        %p592 = scmp.lt.s32.totalorder %s33, 1
        %s593 = scalar_select %p592, %s33, 1
        %s594 = smul.addr %s593, 4
        %s595 = smul.addr %s594, 8
        %s596 = scalar_lea.vmem %s0, %s595
        %p597 = pneg %p54
        %p598 = pneg %p51
        %p599 = pneg %p75
        %p600 = pneg %p72
        %p601 = pneg %p96
        %p602 = pneg %p93
        %p603 = scmp.lt.s32.totalorder %s33, 1
        %s604 = scalar_select %p603, %s33, 1
        %s605 = smul.addr %s604, 4
        %s606 = smul.addr %s605, 4
        %s607 = scalar_lea.vmem %s3, %s606
        %p608 = pneg %p122
        %p609 = pneg %p119
        %p610 = scmp.lt.s32.totalorder %s33, 1
        %s611 = scalar_select %p610, %s33, 1
        %s612 = smul.addr %s611, 4
        %s613 = smul.addr %s612, 4
        %s614 = scalar_lea.vmem %s4, %s613
        %p615 = pneg %p148
        %p616 = pneg %p145
        %p617 = scmp.lt.s32.totalorder %s33, 1
        %s618 = scalar_select %p617, %s33, 1
        %s619 = smul.addr %s618, 4
        %s620 = smul.addr %s619, 4
        %s621 = scalar_lea.vmem %s5, %s620
        %p622 = pneg %p174
        %p623 = pneg %p171
        %p624 = scmp.lt.s32.totalorder %s33, 1
        %s625 = scalar_select %p624, %s33, 1
        %s626 = scalar_lea.vmem %s6, %s625
        %p627 = pneg %p200
        %p628 = pneg %p197
        %p629 = scmp.lt.s32.totalorder %s33, 1
        %s630 = scalar_select %p629, %s33, 1
        %s631 = scalar_lea.vmem %s7, %s630
        %p632 = pneg %p226
        %p633 = pneg %p223
        %p634 = scmp.lt.s32.totalorder %s33, 1
        %s635 = scalar_select %p634, %s33, 1
        %s636 = scalar_lea.vmem %s8, %s635
        %p637 = pneg %p252
        %p638 = pneg %p249
        %s639 = sand.u32 %s265, 1
        %s640 = scalar_lea.sflag [#allocation6], %s639
        %s641 = sand.u32 %s265, 1
        %s642 = smul.addr %s641, 16
        %s643 = scalar_lea.vmem [#allocation5], %s642
        %p644 = pneg %p278
        %p645 = pneg %p275
        %p646 = scmp.lt.s32.totalorder %s33, 1
        %s647 = scalar_select %p646, %s33, 1
        %s648 = scalar_lea.vmem %s10, %s647
        %p649 = pneg %p304
        %p650 = pneg %p301
        %p651 = scmp.lt.s32.totalorder %s33, 1
        %s652 = scalar_select %p651, %s33, 1
        %s653 = smul.addr %s652, 16
        %s654 = smul.addr %s653, 4
        %s655 = scalar_lea.vmem %s11, %s654
        %p656 = pneg %p330
        %p657 = pneg %p327
        %p658 = scmp.lt.s32.totalorder %s33, 1
        %s659 = scalar_select %p658, %s33, 1
        %s660 = scalar_lea.vmem %s12, %s659
        %p661 = pneg %p356
        %p662 = pneg %p353
        %p663 = scmp.lt.s32.totalorder %s33, 1
        %s664 = scalar_select %p663, %s33, 1
        %s665 = scalar_lea.vmem %s13, %s664
        %p666 = pneg %p382
        %p667 = pneg %p379
        %p668 = scmp.lt.s32.totalorder %s33, 1
        %s669 = scalar_select %p668, %s33, 1
        %s670 = scalar_lea.vmem %s14, %s669
        %p671 = pneg %p408
        %p672 = pneg %p405
        %p673 = pneg %p434
        %p674 = pneg %p431
        %s675 = sand.u32 %s421, 1
        %s676 = scalar_lea.sflag [#allocation4], %s675
        %s677 = sand.u32 %s421, 1
        %s678 = smul.addr %s677, 32
        %s679 = scalar_lea.vmem [#allocation7], %s678
        %p680 = scmp.lt.s32.totalorder %s33, 1
        %s681 = scalar_select %p680, %s33, 1
        %s682 = smul.addr %s681, 4
        %s683 = smul.addr %s682, 8
        %s684 = scalar_lea.vmem %s0, %s683
        %p685 = scmp.lt.s32.totalorder %s33, 1
        %s686 = scalar_select %p685, %s33, 1
        %s687 = smul.addr %s686, 4
        %s688 = smul.addr %s687, 4
        %s689 = scalar_lea.vmem %s3, %s688
        %p690 = scmp.lt.s32.totalorder %s33, 1
        %s691 = scalar_select %p690, %s33, 1
        %s692 = smul.addr %s691, 4
        %s693 = smul.addr %s692, 4
        %s694 = scalar_lea.vmem %s4, %s693
        %p695 = scmp.lt.s32.totalorder %s33, 1
        %s696 = scalar_select %p695, %s33, 1
        %s697 = smul.addr %s696, 4
        %s698 = smul.addr %s697, 4
        %s699 = scalar_lea.vmem %s5, %s698
        %p700 = scmp.lt.s32.totalorder %s33, 1
        %s701 = scalar_select %p700, %s33, 1
        %s702 = scalar_lea.vmem %s6, %s701
        %p703 = scmp.lt.s32.totalorder %s33, 1
        %s704 = scalar_select %p703, %s33, 1
        %s705 = scalar_lea.vmem %s7, %s704
        %p706 = scmp.lt.s32.totalorder %s33, 1
        %s707 = scalar_select %p706, %s33, 1
        %s708 = scalar_lea.vmem %s8, %s707
        %p709 = scmp.lt.s32.totalorder %s33, 1
        %s710 = scalar_select %p709, %s33, 1
        %s711 = scalar_lea.vmem %s10, %s710
        %p712 = scmp.lt.s32.totalorder %s33, 1
        %s713 = scalar_select %p712, %s33, 1
        %s714 = smul.addr %s713, 16
        %s715 = smul.addr %s714, 4
        %s716 = scalar_lea.vmem %s11, %s715
        %p717 = scmp.lt.s32.totalorder %s33, 1
        %s718 = scalar_select %p717, %s33, 1
        %s719 = scalar_lea.vmem %s12, %s718
        %p720 = scmp.lt.s32.totalorder %s33, 1
        %s721 = scalar_select %p720, %s33, 1
        %s722 = scalar_lea.vmem %s13, %s721
        %p723 = scmp.lt.s32.totalorder %s33, 1
        %s724 = scalar_select %p723, %s33, 1
        %s725 = scalar_lea.vmem %s14, %s724
        %v727 = vld [vmem:[%s684] sm:$0xff]
        %v728 = vld [vmem:[%s684 + $0x8] sm:$0xff]
        %v729 = vld [vmem:[%s684 + $0x10] sm:$0xff]
        %v730 = vld [vmem:[%s684 + $0x18] sm:$0xff]
        %v731 = vld [vmem:[%s705] sm:$0x1]
        %v732 = vld [vmem:[%s708] sm:$0x1]
        %737 = vrot.lane.b32.xlu0 %v727, 96
        %v738 = vpop.permute.xlu0 %737
        %739 = vrot.lane.b32.xlu0 %v728, 96
        %v740 = vpop.permute.xlu0 %739
        %741 = vrot.lane.b32.xlu0 %v729, 96
        %v742 = vpop.permute.xlu0 %741
        %743 = vrot.lane.b32.xlu0 %v730, 96
        %v744 = vpop.permute.xlu0 %743
        %vm749 = vcmask 261120
        %v750 = vsel %vm749, %v738, 0.0
        %751 = vadd.xlane.f32.xlu0 %v750
        %v752 = vpop.xlane.xlu0 %751
        %v753 = vsel %vm749, %v740, 0.0
        %754 = vadd.xlane.f32.xlu0 %v753
        %v755 = vpop.xlane.xlu0 %754
        %v756 = vsel %vm749, %v742, 0.0
        %757 = vadd.xlane.f32.xlu0 %v756
        %v758 = vpop.xlane.xlu0 %757
        %v759 = vsel %vm749, %v744, 0.0
        %760 = vadd.xlane.f32.xlu0 %v759
        %v761 = vpop.xlane.xlu0 %760
        %v762 = vrcp.pop 32.0
        %v763 = vmul.f32 %v752, %v762
        %v764 = vmul.f32 %v755, %v762
        %v765 = vmul.f32 %v758, %v762
        %v766 = vmul.f32 %v761, %v762
        %v767 = vsub.f32 %v727, %v763
        %v768 = vsub.f32 %v728, %v764
        %v769 = vsub.f32 %v729, %v765
        %v770 = vsub.f32 %v730, %v766
        %v771 = vmul.f32 %v767, %v767
        %v772 = vmul.f32 %v768, %v768
        %v773 = vmul.f32 %v769, %v769
        %v774 = vmul.f32 %v770, %v770
        %779 = vrot.lane.b32.xlu0 %v771, 96
        %v780 = vpop.permute.xlu0 %779
        %781 = vrot.lane.b32.xlu0 %v772, 96
        %v782 = vpop.permute.xlu0 %781
        %783 = vrot.lane.b32.xlu0 %v773, 96
        %v784 = vpop.permute.xlu0 %783
        %785 = vrot.lane.b32.xlu0 %v774, 96
        %v786 = vpop.permute.xlu0 %785
        %v791 = vsel %vm749, %v780, 0.0
        %792 = vadd.xlane.f32.xlu0 %v791
        %v793 = vpop.xlane.xlu0 %792
        %v794 = vsel %vm749, %v782, 0.0
        %795 = vadd.xlane.f32.xlu0 %v794
        %v796 = vpop.xlane.xlu0 %795
        %v797 = vsel %vm749, %v784, 0.0
        %798 = vadd.xlane.f32.xlu0 %v797
        %v799 = vpop.xlane.xlu0 %798
        %v800 = vsel %vm749, %v786, 0.0
        %801 = vadd.xlane.f32.xlu0 %v800
        %v802 = vpop.xlane.xlu0 %801
        %v803 = vmul.f32 %v793, %v762
        %v804 = vmul.f32 %v796, %v762
        %v805 = vmul.f32 %v799, %v762
        %v806 = vmul.f32 %v802, %v762
        %v807 = vadd.f32 %v803, 1e-05
        %v808 = vadd.f32 %v804, 1e-05
        %v809 = vadd.f32 %v805, 1e-05
        %v810 = vadd.f32 %v806, 1e-05
        %v811 = vrsqrt.pop %v807
        %v812 = vrsqrt.pop %v808
        %v813 = vrsqrt.pop %v809
        %v814 = vrsqrt.pop %v810
        %v815 = vmul.f32 %v767, %v811
        %v816 = vmul.f32 %v768, %v812
        %v817 = vmul.f32 %v769, %v813
        %v818 = vmul.f32 %v770, %v814
        %v820 = vlaneseq
        %v821 = vshrl.u32 %v820, 7
        %v822 = vsub.s32 0, %v821
        %v823 = vrot.slane %v731, %v822
        %824 = vrot.lane.b32.xlu0 %v823, 32
        %v825 = vpop.permute.xlu0 %824
        %v827 = vmul.f32 %v815, %v825
        %v828 = vmul.f32 %v816, %v825
        %v829 = vmul.f32 %v817, %v825
        %v830 = vmul.f32 %v818, %v825
        %v832 = vlaneseq
        %v833 = vshrl.u32 %v832, 7
        %v834 = vsub.s32 0, %v833
        %v835 = vrot.slane %v732, %v834
        %836 = vrot.lane.b32.xlu0 %v835, 32
        %v837 = vpop.permute.xlu0 %836
        %v839 = vadd.f32 %v827, %v837
        %v840 = vadd.f32 %v828, %v837
        %v841 = vadd.f32 %v829, %v837
        %v842 = vadd.f32 %v830, %v837
        %v843 = vpack.c.bf16 %v840, %v839
        %v844 = vpack.c.bf16 %v842, %v841
        %v845 = vld [vmem:[%s689] sm:$0xf]
        %v846 = vld [vmem:[%s689 + $0x4] sm:$0xf]
        %v847 = vld [vmem:[%s689 + $0x8] sm:$0xf]
        %v848 = vld [vmem:[%s689 + $0xc] sm:$0xf]
        %851 = vrot.lane.b32.xlu0 %v843, 96
        %v852 = vpop.permute.xlu0 %851
        %853 = vrot.lane.b32.xlu0 %v844, 96
        %v854 = vpop.permute.xlu0 %853
        %v859 = vunpack.c.l.b16 %v845
        %v860 = vunpack.c.l.b16 %v846
        %v861 = vunpack.c.l.b16 %v847
        %v862 = vunpack.c.l.b16 %v848
        %v863 = vpack.c.b16 %v860, %v859
        %v864 = vpack.c.b16 %v862, %v861
        %v868 = vsel %vm749, %v852, 0
        %v871 = vsel %vm749, %v854, 0
        %873 = vmatprep.subr.bf16.mxu0 0
        %874 = vmatpush1.bf16.msra.mxu0 0
        %875 = vmatprep.subr.bf16.mxu0 0
        %876 = vmatpush1.bf16.msra.mxu0 0
        %877 = vmatprep.subr.bf16.mxu0 0
        %878 = vmatpush1.bf16.msra.mxu0 0
        %879 = vmatprep.subr.bf16.mxu0 0
        %880 = vmatpush1.bf16.msra.mxu0 0
        %881 = vmatprep.subr.bf16.mxu0 0
        %882 = vmatpush1.bf16.msra.mxu0 0
        %883 = vmatprep.subr.bf16.mxu0 0
        %884 = vmatpush1.bf16.msra.mxu0 0
        %885 = vmatprep.subr.bf16.mxu0 0
        %886 = vmatpush1.bf16.msra.mxu0 %v864
        %887 = vmatprep.subr.bf16.mxu0 0
        %888 = vmatpush1.bf16.msra.mxu0 %v863
        %889 = vmatprep.subr.bf16.mxu0 0
        %890 = vmatpush2.bf16.msra.mxu0 0
        %891 = vmatprep.subr.bf16.mxu0 0
        %892 = vmatpush2.bf16.msra.mxu0 0
        %893 = vmatprep.subr.bf16.mxu0 0
        %894 = vmatpush2.bf16.msra.mxu0 0
        %895 = vmatprep.subr.bf16.mxu0 0
        %896 = vmatpush2.bf16.msra.mxu0 0
        %897 = vmatprep.subr.bf16.mxu0 0
        %898 = vmatpush2.bf16.msra.mxu0 0
        %899 = vmatprep.subr.bf16.mxu0 0
        %900 = vmatpush2.bf16.msra.mxu0 0
        %901 = vmatprep.subr.bf16.mxu0 0
        %902 = vmatpush2.bf16.msra.mxu0 0
        %903 = vmatprep.subr.bf16.mxu0 0
        %904 = vmatpush2.bf16.msra.mxu0 0
        %905 = vmatprep.mubr.bf16.mxu0 0
        %906 = vmatmul.mubr.bf16.gmra.mxu0 %v868
        %v907 = vpop.f32.mrf.mxu0
        %v908 = vadd.f32 0.0, %v907
        %v909 = vpop.f32.mrf.mxu0
        %v910 = vpop.f32.mrf.mxu0
        %v911 = vadd.f32 0.0, %v910
        %v912 = vpop.f32.mrf.mxu0
        %913 = vmatprep.mubr.bf16.mxu0 0
        %914 = vmatmul.mubr.bf16.gmra.mxu0 %v871
        %v915 = vpop.f32.mrf.mxu0
        %v916 = vadd.f32 0.0, %v915
        %v917 = vpop.f32.mrf.mxu0
        %v918 = vpop.f32.mrf.mxu0
        %v919 = vadd.f32 0.0, %v918
        %v920 = vpop.f32.mrf.mxu0
        %921 = vdwg.mxu0
        %v922 = vmul.f32 %v908, 0.25
        %v923 = vmul.f32 %v911, 0.25
        %v924 = vmul.f32 %v916, 0.25
        %v925 = vmul.f32 %v919, 0.25
        %v926 = vld [vmem:[#allocation2] sm:$0xf]
        %v927 = vld [vmem:[#allocation2 + $0x4] sm:$0xf]
        %v928 = vld [vmem:[%s694] sm:$0xf]
        %v929 = vld [vmem:[%s694 + $0x4] sm:$0xf]
        %v930 = vld [vmem:[%s694 + $0x8] sm:$0xf]
        %v931 = vld [vmem:[%s694 + $0xc] sm:$0xf]
        %v934 = vunpack.c.l.b16 %v926
        %v935 = vunpack.c.l.b16 %v927
        %v936 = vpack.c.b16 %v935, %v934
        %v941 = vunpack.c.l.b16 %v928
        %v942 = vunpack.c.l.b16 %v929
        %v943 = vunpack.c.l.b16 %v930
        %v944 = vunpack.c.l.b16 %v931
        %v945 = vpack.c.b16 %v942, %v941
        %v946 = vpack.c.b16 %v944, %v943
        %v950 = vsel %vm749, %v936, 0
        %952 = vmatprep.subr.bf16.mxu0 0
        %953 = vmatpush1.bf16.msra.mxu0 0
        %954 = vmatprep.subr.bf16.mxu0 0
        %955 = vmatpush1.bf16.msra.mxu0 0
        %956 = vmatprep.subr.bf16.mxu0 0
        %957 = vmatpush1.bf16.msra.mxu0 0
        %958 = vmatprep.subr.bf16.mxu0 0
        %959 = vmatpush1.bf16.msra.mxu0 0
        %960 = vmatprep.subr.bf16.mxu0 0
        %961 = vmatpush1.bf16.msra.mxu0 0
        %962 = vmatprep.subr.bf16.mxu0 0
        %963 = vmatpush1.bf16.msra.mxu0 0
        %964 = vmatprep.subr.bf16.mxu0 0
        %965 = vmatpush1.bf16.msra.mxu0 %v946
        %966 = vmatprep.subr.bf16.mxu0 0
        %967 = vmatpush1.bf16.msra.mxu0 %v945
        %968 = vmatprep.subr.bf16.mxu0 0
        %969 = vmatpush2.bf16.msra.mxu0 0
        %970 = vmatprep.subr.bf16.mxu0 0
        %971 = vmatpush2.bf16.msra.mxu0 0
        %972 = vmatprep.subr.bf16.mxu0 0
        %973 = vmatpush2.bf16.msra.mxu0 0
        %974 = vmatprep.subr.bf16.mxu0 0
        %975 = vmatpush2.bf16.msra.mxu0 0
        %976 = vmatprep.subr.bf16.mxu0 0
        %977 = vmatpush2.bf16.msra.mxu0 0
        %978 = vmatprep.subr.bf16.mxu0 0
        %979 = vmatpush2.bf16.msra.mxu0 0
        %980 = vmatprep.subr.bf16.mxu0 0
        %981 = vmatpush2.bf16.msra.mxu0 0
        %982 = vmatprep.subr.bf16.mxu0 0
        %983 = vmatpush2.bf16.msra.mxu0 0
        %984 = vmatprep.mubr.bf16.mxu0 0
        %985 = vmatmul.mubr.bf16.gmra.mxu0 %v950
        %v986 = vpop.f32.mrf.mxu0
        %v987 = vadd.f32 0.0, %v986
        %v988 = vpop.f32.mrf.mxu0
        %v989 = vpop.f32.mrf.mxu0
        %v990 = vadd.f32 0.0, %v989
        %v991 = vpop.f32.mrf.mxu0
        %992 = vdwg.mxu0
        %v993 = vld [vmem:[%s699] sm:$0xf]
        %v994 = vld [vmem:[%s699 + $0x4] sm:$0xf]
        %v995 = vld [vmem:[%s699 + $0x8] sm:$0xf]
        %v996 = vld [vmem:[%s699 + $0xc] sm:$0xf]
        %v997 = vld [vmem:[%s2] sm:$0x1]
        %v998 = vsub.f32 %v997, 1.0
        %v999 = vmul.f32 %v998, 1e+09
        %v1000 = vpack.c.bf16 %v923, %v922
        %v1001 = vpack.c.bf16 %v987, %v987
        %v1003 = vlaneseq
        %v1004 = vshrl.u32 %v1003, 7
        %v1005 = vsub.s32 0, %v1004
        %v1006 = vrot.slane %v999, %v1005
        %vm1008 = vcmask 130048
        %v1010 = vsel %vm1008, %v1000, 0
        %v1013 = vsel %vm1008, %v1001, 0
        %1015 = vmatprep.subr.bf16.mxu0 0
        %1016 = vmatpush1.bf16.xpose.msra.mxu0 0
        %1017 = vmatprep.subr.bf16.mxu0 0
        %1018 = vmatpush1.bf16.xpose.msra.mxu0 0
        %1019 = vmatprep.subr.bf16.mxu0 0
        %1020 = vmatpush1.bf16.xpose.msra.mxu0 0
        %1021 = vmatprep.subr.bf16.mxu0 0
        %1022 = vmatpush1.bf16.xpose.msra.mxu0 0
        %1023 = vmatprep.subr.bf16.mxu0 0
        %1024 = vmatpush1.bf16.xpose.msra.mxu0 0
        %1025 = vmatprep.subr.bf16.mxu0 0
        %1026 = vmatpush1.bf16.xpose.msra.mxu0 0
        %1027 = vmatprep.subr.bf16.mxu0 0
        %1028 = vmatpush1.bf16.xpose.msra.mxu0 0
        %1029 = vmatprep.subr.bf16.mxu0 0
        %1030 = vmatpush1.bf16.xpose.msra.mxu0 %v1013
        %1031 = vmatprep.subr.bf16.mxu0 0
        %1032 = vmatpush2.bf16.xpose.msra.mxu0 0
        %1033 = vmatprep.subr.bf16.mxu0 0
        %1034 = vmatpush2.bf16.xpose.msra.mxu0 0
        %1035 = vmatprep.subr.bf16.mxu0 0
        %1036 = vmatpush2.bf16.xpose.msra.mxu0 0
        %1037 = vmatprep.subr.bf16.mxu0 0
        %1038 = vmatpush2.bf16.xpose.msra.mxu0 0
        %1039 = vmatprep.subr.bf16.mxu0 0
        %1040 = vmatpush2.bf16.xpose.msra.mxu0 0
        %1041 = vmatprep.subr.bf16.mxu0 0
        %1042 = vmatpush2.bf16.xpose.msra.mxu0 0
        %1043 = vmatprep.subr.bf16.mxu0 0
        %1044 = vmatpush2.bf16.xpose.msra.mxu0 0
        %1045 = vmatprep.subr.bf16.mxu0 0
        %1046 = vmatpush2.bf16.xpose.msra.mxu0 0
        %1047 = vmatprep.mubr.bf16.mxu0 0
        %1048 = vmatmul.mubr.bf16.gmra.mxu0 %v1010
        %v1049 = vpop.f32.mrf.mxu0
        %v1050 = vadd.f32 %v1006, %v1049
        %v1051 = vpop.f32.mrf.mxu0
        %v1052 = vpop.f32.mrf.mxu0
        %v1053 = vadd.f32 %v1006, %v1052
        %v1054 = vpop.f32.mrf.mxu0
        %1055 = vdwg.mxu0
        %vm1056 = vcmask 64512
        %v1057 = vsel %vm1056, %v1050, -inf
        %1058 = vmax.xlane.f32.xlu0 %v1057
        %v1059 = vpop.xlane.xlu0 %1058
        %v1060 = vsel %vm1056, %v1053, -inf
        %1061 = vmax.xlane.f32.xlu0 %v1060
        %v1062 = vpop.xlane.xlu0 %1061
        %v1063 = vsub.f32 %v1050, %v1059
        %v1064 = vsub.f32 %v1053, %v1062
        %v1065 = vmul.f32 %v1063, 1.442695
        %v1066 = vpow.pop %v1065
        %v1067 = vmul.f32 %v1064, 1.442695
        %v1068 = vpow.pop %v1067
        %v1069 = vsel %vm1056, %v1066, 0.0
        %1070 = vadd.xlane.f32.xlu0 %v1069
        %v1071 = vpop.xlane.xlu0 %1070
        %v1072 = vsel %vm1056, %v1068, 0.0
        %1073 = vadd.xlane.f32.xlu0 %v1072
        %v1074 = vpop.xlane.xlu0 %1073
        %v1075 = vrcp.pop %v1071
        %v1076 = vrcp.pop %v1074
        %v1077 = vmul.f32 %v1066, %v1075
        %v1078 = vmul.f32 %v1068, %v1076
        %v1079 = vpack.c.bf16 %v1078, %v1077
        %1081 = vrot.lane.b32.xlu0 %v1001, 96
        %v1082 = vpop.permute.xlu0 %1081
        %v1084 = vsel %vm1056, %v1079, 0
        %vm1086 = vcmask 1043456
        %v1088 = vsel %vm1086, %v1082, 0
        %1090 = vmatprep.subr.bf16.mxu0 0
        %1091 = vmatpush1.bf16.msra.mxu0 0
        %1092 = vmatprep.subr.bf16.mxu0 0
        %1093 = vmatpush1.bf16.msra.mxu0 0
        %1094 = vmatprep.subr.bf16.mxu0 0
        %1095 = vmatpush1.bf16.msra.mxu0 0
        %1096 = vmatprep.subr.bf16.mxu0 0
        %1097 = vmatpush1.bf16.msra.mxu0 0
        %1098 = vmatprep.subr.bf16.mxu0 0
        %1099 = vmatpush1.bf16.msra.mxu0 0
        %1100 = vmatprep.subr.bf16.mxu0 0
        %1101 = vmatpush1.bf16.msra.mxu0 0
        %1102 = vmatprep.subr.bf16.mxu0 0
        %1103 = vmatpush1.bf16.msra.mxu0 0
        %1104 = vmatprep.subr.bf16.mxu0 0
        %1105 = vmatpush1.bf16.msra.mxu0 %v1088
        %1106 = vmatprep.subr.bf16.mxu0 0
        %1107 = vmatpush2.bf16.msra.mxu0 0
        %1108 = vmatprep.subr.bf16.mxu0 0
        %1109 = vmatpush2.bf16.msra.mxu0 0
        %1110 = vmatprep.subr.bf16.mxu0 0
        %1111 = vmatpush2.bf16.msra.mxu0 0
        %1112 = vmatprep.subr.bf16.mxu0 0
        %1113 = vmatpush2.bf16.msra.mxu0 0
        %1114 = vmatprep.subr.bf16.mxu0 0
        %1115 = vmatpush2.bf16.msra.mxu0 0
        %1116 = vmatprep.subr.bf16.mxu0 0
        %1117 = vmatpush2.bf16.msra.mxu0 0
        %1118 = vmatprep.subr.bf16.mxu0 0
        %1119 = vmatpush2.bf16.msra.mxu0 0
        %1120 = vmatprep.subr.bf16.mxu0 0
        %1121 = vmatpush2.bf16.msra.mxu0 0
        %1122 = vmatprep.mubr.bf16.mxu0 0
        %1123 = vmatmul.mubr.bf16.gmra.mxu0 %v1084
        %v1124 = vpop.f32.mrf.mxu0
        %v1125 = vadd.f32 0.0, %v1124
        %v1126 = vpop.f32.mrf.mxu0
        %v1127 = vpop.f32.mrf.mxu0
        %v1128 = vadd.f32 0.0, %v1127
        %v1129 = vpop.f32.mrf.mxu0
        %1130 = vdwg.mxu0
        %v1131 = vpack.c.bf16 %v1128, %v1125
        %1133 = vrot.lane.b32.xlu0 %v1000, 112
        %v1134 = vpop.permute.xlu0 %1133
        %1135 = vrot.lane.b32.xlu0 %v1001, 112
        %v1136 = vpop.permute.xlu0 %1135
        %v1138 = vsel %vm1008, %v1134, 0
        %v1141 = vsel %vm1008, %v1136, 0
        %1143 = vmatprep.subr.bf16.mxu0 0
        %1144 = vmatpush1.bf16.xpose.msra.mxu0 0
        %1145 = vmatprep.subr.bf16.mxu0 0
        %1146 = vmatpush1.bf16.xpose.msra.mxu0 0
        %1147 = vmatprep.subr.bf16.mxu0 0
        %1148 = vmatpush1.bf16.xpose.msra.mxu0 0
        %1149 = vmatprep.subr.bf16.mxu0 0
        %1150 = vmatpush1.bf16.xpose.msra.mxu0 0
        %1151 = vmatprep.subr.bf16.mxu0 0
        %1152 = vmatpush1.bf16.xpose.msra.mxu0 0
        %1153 = vmatprep.subr.bf16.mxu0 0
        %1154 = vmatpush1.bf16.xpose.msra.mxu0 0
        %1155 = vmatprep.subr.bf16.mxu0 0
        %1156 = vmatpush1.bf16.xpose.msra.mxu0 0
        %1157 = vmatprep.subr.bf16.mxu0 0
        %1158 = vmatpush1.bf16.xpose.msra.mxu0 %v1141
        %1159 = vmatprep.subr.bf16.mxu0 0
        %1160 = vmatpush2.bf16.xpose.msra.mxu0 0
        %1161 = vmatprep.subr.bf16.mxu0 0
        %1162 = vmatpush2.bf16.xpose.msra.mxu0 0
        %1163 = vmatprep.subr.bf16.mxu0 0
        %1164 = vmatpush2.bf16.xpose.msra.mxu0 0
        %1165 = vmatprep.subr.bf16.mxu0 0
        %1166 = vmatpush2.bf16.xpose.msra.mxu0 0
        %1167 = vmatprep.subr.bf16.mxu0 0
        %1168 = vmatpush2.bf16.xpose.msra.mxu0 0
        %1169 = vmatprep.subr.bf16.mxu0 0
        %1170 = vmatpush2.bf16.xpose.msra.mxu0 0
        %1171 = vmatprep.subr.bf16.mxu0 0
        %1172 = vmatpush2.bf16.xpose.msra.mxu0 0
        %1173 = vmatprep.subr.bf16.mxu0 0
        %1174 = vmatpush2.bf16.xpose.msra.mxu0 0
        %1175 = vmatprep.mubr.bf16.mxu0 0
        %1176 = vmatmul.mubr.bf16.gmra.mxu0 %v1138
        %v1177 = vpop.f32.mrf.mxu0
        %v1178 = vadd.f32 %v1006, %v1177
        %v1179 = vpop.f32.mrf.mxu0
        %v1180 = vpop.f32.mrf.mxu0
        %v1181 = vadd.f32 %v1006, %v1180
        %v1182 = vpop.f32.mrf.mxu0
        %1183 = vdwg.mxu0
        %v1184 = vsel %vm1056, %v1178, -inf
        %1185 = vmax.xlane.f32.xlu0 %v1184
        %v1186 = vpop.xlane.xlu0 %1185
        %v1187 = vsel %vm1056, %v1181, -inf
        %1188 = vmax.xlane.f32.xlu0 %v1187
        %v1189 = vpop.xlane.xlu0 %1188
        %v1190 = vsub.f32 %v1178, %v1186
        %v1191 = vsub.f32 %v1181, %v1189
        %v1192 = vmul.f32 %v1190, 1.442695
        %v1193 = vpow.pop %v1192
        %v1194 = vmul.f32 %v1191, 1.442695
        %v1195 = vpow.pop %v1194
        %v1196 = vsel %vm1056, %v1193, 0.0
        %1197 = vadd.xlane.f32.xlu0 %v1196
        %v1198 = vpop.xlane.xlu0 %1197
        %v1199 = vsel %vm1056, %v1195, 0.0
        %1200 = vadd.xlane.f32.xlu0 %v1199
        %v1201 = vpop.xlane.xlu0 %1200
        %v1202 = vrcp.pop %v1198
        %v1203 = vrcp.pop %v1201
        %v1204 = vmul.f32 %v1193, %v1202
        %v1205 = vmul.f32 %v1195, %v1203
        %v1206 = vpack.c.bf16 %v1205, %v1204
        %1207 = vrot.lane.b32.xlu0 %v1001, 80
        %v1208 = vpop.permute.xlu0 %1207
        %v1210 = vsel %vm1056, %v1206, 0
        %v1213 = vsel %vm1086, %v1208, 0
        %1215 = vmatprep.subr.bf16.mxu0 0
        %1216 = vmatpush1.bf16.msra.mxu0 0
        %1217 = vmatprep.subr.bf16.mxu0 0
        %1218 = vmatpush1.bf16.msra.mxu0 0
        %1219 = vmatprep.subr.bf16.mxu0 0
        %1220 = vmatpush1.bf16.msra.mxu0 0
        %1221 = vmatprep.subr.bf16.mxu0 0
        %1222 = vmatpush1.bf16.msra.mxu0 0
        %1223 = vmatprep.subr.bf16.mxu0 0
        %1224 = vmatpush1.bf16.msra.mxu0 0
        %1225 = vmatprep.subr.bf16.mxu0 0
        %1226 = vmatpush1.bf16.msra.mxu0 0
        %1227 = vmatprep.subr.bf16.mxu0 0
        %1228 = vmatpush1.bf16.msra.mxu0 0
        %1229 = vmatprep.subr.bf16.mxu0 0
        %1230 = vmatpush1.bf16.msra.mxu0 %v1213
        %1231 = vmatprep.subr.bf16.mxu0 0
        %1232 = vmatpush2.bf16.msra.mxu0 0
        %1233 = vmatprep.subr.bf16.mxu0 0
        %1234 = vmatpush2.bf16.msra.mxu0 0
        %1235 = vmatprep.subr.bf16.mxu0 0
        %1236 = vmatpush2.bf16.msra.mxu0 0
        %1237 = vmatprep.subr.bf16.mxu0 0
        %1238 = vmatpush2.bf16.msra.mxu0 0
        %1239 = vmatprep.subr.bf16.mxu0 0
        %1240 = vmatpush2.bf16.msra.mxu0 0
        %1241 = vmatprep.subr.bf16.mxu0 0
        %1242 = vmatpush2.bf16.msra.mxu0 0
        %1243 = vmatprep.subr.bf16.mxu0 0
        %1244 = vmatpush2.bf16.msra.mxu0 0
        %1245 = vmatprep.subr.bf16.mxu0 0
        %1246 = vmatpush2.bf16.msra.mxu0 0
        %1247 = vmatprep.mubr.bf16.mxu0 0
        %1248 = vmatmul.mubr.bf16.gmra.mxu0 %v1210
        %v1249 = vpop.f32.mrf.mxu0
        %v1250 = vadd.f32 0.0, %v1249
        %v1251 = vpop.f32.mrf.mxu0
        %v1252 = vpop.f32.mrf.mxu0
        %v1253 = vadd.f32 0.0, %v1252
        %v1254 = vpop.f32.mrf.mxu0
        %1255 = vdwg.mxu0
        %v1256 = vpack.c.bf16 %v1253, %v1250
        %v1259 = vunpack.c.l.b16 %v995
        %v1260 = vunpack.c.l.b16 %v996
        %v1261 = vpack.c.b16 %v1260, %v1259
        %v1264 = vsel %vm1008, %v1256, 0
        %1266 = vmatprep.subr.bf16.mxu0 0
        %1267 = vmatpush1.bf16.msra.mxu0 0
        %1268 = vmatprep.subr.bf16.mxu0 0
        %1269 = vmatpush1.bf16.msra.mxu0 0
        %1270 = vmatprep.subr.bf16.mxu0 0
        %1271 = vmatpush1.bf16.msra.mxu0 0
        %1272 = vmatprep.subr.bf16.mxu0 0
        %1273 = vmatpush1.bf16.msra.mxu0 0
        %1274 = vmatprep.subr.bf16.mxu0 0
        %1275 = vmatpush1.bf16.msra.mxu0 0
        %1276 = vmatprep.subr.bf16.mxu0 0
        %1277 = vmatpush1.bf16.msra.mxu0 0
        %1278 = vmatprep.subr.bf16.mxu0 0
        %1279 = vmatpush1.bf16.msra.mxu0 0
        %1280 = vmatprep.subr.bf16.mxu0 0
        %1281 = vmatpush1.bf16.msra.mxu0 %v1261
        %1282 = vmatprep.subr.bf16.mxu0 0
        %1283 = vmatpush2.bf16.msra.mxu0 0
        %1284 = vmatprep.subr.bf16.mxu0 0
        %1285 = vmatpush2.bf16.msra.mxu0 0
        %1286 = vmatprep.subr.bf16.mxu0 0
        %1287 = vmatpush2.bf16.msra.mxu0 0
        %1288 = vmatprep.subr.bf16.mxu0 0
        %1289 = vmatpush2.bf16.msra.mxu0 0
        %1290 = vmatprep.subr.bf16.mxu0 0
        %1291 = vmatpush2.bf16.msra.mxu0 0
        %1292 = vmatprep.subr.bf16.mxu0 0
        %1293 = vmatpush2.bf16.msra.mxu0 0
        %1294 = vmatprep.subr.bf16.mxu0 0
        %1295 = vmatpush2.bf16.msra.mxu0 0
        %1296 = vmatprep.subr.bf16.mxu0 0
        %1297 = vmatpush2.bf16.msra.mxu0 0
        %1298 = vmatprep.mubr.bf16.mxu0 0
        %1299 = vmatmul.mubr.bf16.gmra.mxu0 %v1264
        %v1300 = vpop.f32.mrf.mxu0
        %v1301 = vadd.f32 0.0, %v1300
        %v1302 = vpop.f32.mrf.mxu0
        %v1303 = vpop.f32.mrf.mxu0
        %v1304 = vadd.f32 0.0, %v1303
        %v1305 = vpop.f32.mrf.mxu0
        %1306 = vdwg.mxu0
        %v1309 = vunpack.c.l.b16 %v993
        %v1310 = vunpack.c.l.b16 %v994
        %v1311 = vpack.c.b16 %v1310, %v1309
        %v1314 = vsel %vm1008, %v1131, 0
        %1316 = vmatprep.subr.bf16.mxu0 0
        %1317 = vmatpush1.bf16.msra.mxu0 0
        %1318 = vmatprep.subr.bf16.mxu0 0
        %1319 = vmatpush1.bf16.msra.mxu0 0
        %1320 = vmatprep.subr.bf16.mxu0 0
        %1321 = vmatpush1.bf16.msra.mxu0 0
        %1322 = vmatprep.subr.bf16.mxu0 0
        %1323 = vmatpush1.bf16.msra.mxu0 0
        %1324 = vmatprep.subr.bf16.mxu0 0
        %1325 = vmatpush1.bf16.msra.mxu0 0
        %1326 = vmatprep.subr.bf16.mxu0 0
        %1327 = vmatpush1.bf16.msra.mxu0 0
        %1328 = vmatprep.subr.bf16.mxu0 0
        %1329 = vmatpush1.bf16.msra.mxu0 0
        %1330 = vmatprep.subr.bf16.mxu0 0
        %1331 = vmatpush1.bf16.msra.mxu0 %v1311
        %1332 = vmatprep.subr.bf16.mxu0 0
        %1333 = vmatpush2.bf16.msra.mxu0 0
        %1334 = vmatprep.subr.bf16.mxu0 0
        %1335 = vmatpush2.bf16.msra.mxu0 0
        %1336 = vmatprep.subr.bf16.mxu0 0
        %1337 = vmatpush2.bf16.msra.mxu0 0
        %1338 = vmatprep.subr.bf16.mxu0 0
        %1339 = vmatpush2.bf16.msra.mxu0 0
        %1340 = vmatprep.subr.bf16.mxu0 0
        %1341 = vmatpush2.bf16.msra.mxu0 0
        %1342 = vmatprep.subr.bf16.mxu0 0
        %1343 = vmatpush2.bf16.msra.mxu0 0
        %1344 = vmatprep.subr.bf16.mxu0 0
        %1345 = vmatpush2.bf16.msra.mxu0 0
        %1346 = vmatprep.subr.bf16.mxu0 0
        %1347 = vmatpush2.bf16.msra.mxu0 0
        %1348 = vmatprep.mubr.bf16.mxu0 0
        %1349 = vmatmul.mubr.bf16.gmra.mxu0 %v1314
        %v1350 = vpop.f32.mrf.mxu0
        %v1351 = vadd.f32 %v1301, %v1350
        %v1352 = vpop.f32.mrf.mxu0
        %v1353 = vpop.f32.mrf.mxu0
        %v1354 = vadd.f32 %v1304, %v1353
        %v1355 = vpop.f32.mrf.mxu0
        %1356 = vdwg.mxu0
        %s1357 = scalar_lea.vmem %s2, 1
        %v1358 = vld [vmem:[%s1357] sm:$0x1]
        %v1359 = vsub.f32 %v1358, 1.0
        %v1360 = vmul.f32 %v1359, 1e+09
        %v1361 = vpack.c.bf16 %v925, %v924
        %v1362 = vpack.c.bf16 %v990, %v990
        %v1364 = vlaneseq
        %v1365 = vshrl.u32 %v1364, 7
        %v1366 = vsub.s32 0, %v1365
        %v1367 = vrot.slane %v1360, %v1366
        %v1370 = vsel %vm1008, %v1361, 0
        %v1373 = vsel %vm1008, %v1362, 0
        %1375 = vmatprep.subr.bf16.mxu0 0
        %1376 = vmatpush1.bf16.xpose.msra.mxu0 0
        %1377 = vmatprep.subr.bf16.mxu0 0
        %1378 = vmatpush1.bf16.xpose.msra.mxu0 0
        %1379 = vmatprep.subr.bf16.mxu0 0
        %1380 = vmatpush1.bf16.xpose.msra.mxu0 0
        %1381 = vmatprep.subr.bf16.mxu0 0
        %1382 = vmatpush1.bf16.xpose.msra.mxu0 0
        %1383 = vmatprep.subr.bf16.mxu0 0
        %1384 = vmatpush1.bf16.xpose.msra.mxu0 0
        %1385 = vmatprep.subr.bf16.mxu0 0
        %1386 = vmatpush1.bf16.xpose.msra.mxu0 0
        %1387 = vmatprep.subr.bf16.mxu0 0
        %1388 = vmatpush1.bf16.xpose.msra.mxu0 0
        %1389 = vmatprep.subr.bf16.mxu0 0
        %1390 = vmatpush1.bf16.xpose.msra.mxu0 %v1373
        %1391 = vmatprep.subr.bf16.mxu0 0
        %1392 = vmatpush2.bf16.xpose.msra.mxu0 0
        %1393 = vmatprep.subr.bf16.mxu0 0
        %1394 = vmatpush2.bf16.xpose.msra.mxu0 0
        %1395 = vmatprep.subr.bf16.mxu0 0
        %1396 = vmatpush2.bf16.xpose.msra.mxu0 0
        %1397 = vmatprep.subr.bf16.mxu0 0
        %1398 = vmatpush2.bf16.xpose.msra.mxu0 0
        %1399 = vmatprep.subr.bf16.mxu0 0
        %1400 = vmatpush2.bf16.xpose.msra.mxu0 0
        %1401 = vmatprep.subr.bf16.mxu0 0
        %1402 = vmatpush2.bf16.xpose.msra.mxu0 0
        %1403 = vmatprep.subr.bf16.mxu0 0
        %1404 = vmatpush2.bf16.xpose.msra.mxu0 0
        %1405 = vmatprep.subr.bf16.mxu0 0
        %1406 = vmatpush2.bf16.xpose.msra.mxu0 0
        %1407 = vmatprep.mubr.bf16.mxu0 0
        %1408 = vmatmul.mubr.bf16.gmra.mxu0 %v1370
        %v1409 = vpop.f32.mrf.mxu0
        %v1410 = vadd.f32 %v1367, %v1409
        %v1411 = vpop.f32.mrf.mxu0
        %v1412 = vpop.f32.mrf.mxu0
        %v1413 = vadd.f32 %v1367, %v1412
        %v1414 = vpop.f32.mrf.mxu0
        %1415 = vdwg.mxu0
        %v1416 = vsel %vm1056, %v1410, -inf
        %1417 = vmax.xlane.f32.xlu0 %v1416
        %v1418 = vpop.xlane.xlu0 %1417
        %v1419 = vsel %vm1056, %v1413, -inf
        %1420 = vmax.xlane.f32.xlu0 %v1419
        %v1421 = vpop.xlane.xlu0 %1420
        %v1422 = vsub.f32 %v1410, %v1418
        %v1423 = vsub.f32 %v1413, %v1421
        %v1424 = vmul.f32 %v1422, 1.442695
        %v1425 = vpow.pop %v1424
        %v1426 = vmul.f32 %v1423, 1.442695
        %v1427 = vpow.pop %v1426
        %v1428 = vsel %vm1056, %v1425, 0.0
        %1429 = vadd.xlane.f32.xlu0 %v1428
        %v1430 = vpop.xlane.xlu0 %1429
        %v1431 = vsel %vm1056, %v1427, 0.0
        %1432 = vadd.xlane.f32.xlu0 %v1431
        %v1433 = vpop.xlane.xlu0 %1432
        %v1434 = vrcp.pop %v1430
        %v1435 = vrcp.pop %v1433
        %v1436 = vmul.f32 %v1425, %v1434
        %v1437 = vmul.f32 %v1427, %v1435
        %v1438 = vpack.c.bf16 %v1437, %v1436
        %1440 = vrot.lane.b32.xlu0 %v1362, 96
        %v1441 = vpop.permute.xlu0 %1440
        %v1443 = vsel %vm1056, %v1438, 0
        %v1446 = vsel %vm1086, %v1441, 0
        %1448 = vmatprep.subr.bf16.mxu0 0
        %1449 = vmatpush1.bf16.msra.mxu0 0
        %1450 = vmatprep.subr.bf16.mxu0 0
        %1451 = vmatpush1.bf16.msra.mxu0 0
        %1452 = vmatprep.subr.bf16.mxu0 0
        %1453 = vmatpush1.bf16.msra.mxu0 0
        %1454 = vmatprep.subr.bf16.mxu0 0
        %1455 = vmatpush1.bf16.msra.mxu0 0
        %1456 = vmatprep.subr.bf16.mxu0 0
        %1457 = vmatpush1.bf16.msra.mxu0 0
        %1458 = vmatprep.subr.bf16.mxu0 0
        %1459 = vmatpush1.bf16.msra.mxu0 0
        %1460 = vmatprep.subr.bf16.mxu0 0
        %1461 = vmatpush1.bf16.msra.mxu0 0
        %1462 = vmatprep.subr.bf16.mxu0 0
        %1463 = vmatpush1.bf16.msra.mxu0 %v1446
        %1464 = vmatprep.subr.bf16.mxu0 0
        %1465 = vmatpush2.bf16.msra.mxu0 0
        %1466 = vmatprep.subr.bf16.mxu0 0
        %1467 = vmatpush2.bf16.msra.mxu0 0
        %1468 = vmatprep.subr.bf16.mxu0 0
        %1469 = vmatpush2.bf16.msra.mxu0 0
        %1470 = vmatprep.subr.bf16.mxu0 0
        %1471 = vmatpush2.bf16.msra.mxu0 0
        %1472 = vmatprep.subr.bf16.mxu0 0
        %1473 = vmatpush2.bf16.msra.mxu0 0
        %1474 = vmatprep.subr.bf16.mxu0 0
        %1475 = vmatpush2.bf16.msra.mxu0 0
        %1476 = vmatprep.subr.bf16.mxu0 0
        %1477 = vmatpush2.bf16.msra.mxu0 0
        %1478 = vmatprep.subr.bf16.mxu0 0
        %1479 = vmatpush2.bf16.msra.mxu0 0
        %1480 = vmatprep.mubr.bf16.mxu0 0
        %1481 = vmatmul.mubr.bf16.gmra.mxu0 %v1443
        %v1482 = vpop.f32.mrf.mxu0
        %v1483 = vadd.f32 0.0, %v1482
        %v1484 = vpop.f32.mrf.mxu0
        %v1485 = vpop.f32.mrf.mxu0
        %v1486 = vadd.f32 0.0, %v1485
        %v1487 = vpop.f32.mrf.mxu0
        %1488 = vdwg.mxu0
        %v1489 = vpack.c.bf16 %v1486, %v1483
        %1491 = vrot.lane.b32.xlu0 %v1361, 112
        %v1492 = vpop.permute.xlu0 %1491
        %1493 = vrot.lane.b32.xlu0 %v1362, 112
        %v1494 = vpop.permute.xlu0 %1493
        %v1496 = vsel %vm1008, %v1492, 0
        %v1499 = vsel %vm1008, %v1494, 0
        %1501 = vmatprep.subr.bf16.mxu0 0
        %1502 = vmatpush1.bf16.xpose.msra.mxu0 0
        %1503 = vmatprep.subr.bf16.mxu0 0
        %1504 = vmatpush1.bf16.xpose.msra.mxu0 0
        %1505 = vmatprep.subr.bf16.mxu0 0
        %1506 = vmatpush1.bf16.xpose.msra.mxu0 0
        %1507 = vmatprep.subr.bf16.mxu0 0
        %1508 = vmatpush1.bf16.xpose.msra.mxu0 0
        %1509 = vmatprep.subr.bf16.mxu0 0
        %1510 = vmatpush1.bf16.xpose.msra.mxu0 0
        %1511 = vmatprep.subr.bf16.mxu0 0
        %1512 = vmatpush1.bf16.xpose.msra.mxu0 0
        %1513 = vmatprep.subr.bf16.mxu0 0
        %1514 = vmatpush1.bf16.xpose.msra.mxu0 0
        %1515 = vmatprep.subr.bf16.mxu0 0
        %1516 = vmatpush1.bf16.xpose.msra.mxu0 %v1499
        %1517 = vmatprep.subr.bf16.mxu0 0
        %1518 = vmatpush2.bf16.xpose.msra.mxu0 0
        %1519 = vmatprep.subr.bf16.mxu0 0
        %1520 = vmatpush2.bf16.xpose.msra.mxu0 0
        %1521 = vmatprep.subr.bf16.mxu0 0
        %1522 = vmatpush2.bf16.xpose.msra.mxu0 0
        %1523 = vmatprep.subr.bf16.mxu0 0
        %1524 = vmatpush2.bf16.xpose.msra.mxu0 0
        %1525 = vmatprep.subr.bf16.mxu0 0
        %1526 = vmatpush2.bf16.xpose.msra.mxu0 0
        %1527 = vmatprep.subr.bf16.mxu0 0
        %1528 = vmatpush2.bf16.xpose.msra.mxu0 0
        %1529 = vmatprep.subr.bf16.mxu0 0
        %1530 = vmatpush2.bf16.xpose.msra.mxu0 0
        %1531 = vmatprep.subr.bf16.mxu0 0
        %1532 = vmatpush2.bf16.xpose.msra.mxu0 0
        %1533 = vmatprep.mubr.bf16.mxu0 0
        %1534 = vmatmul.mubr.bf16.gmra.mxu0 %v1496
        %v1535 = vpop.f32.mrf.mxu0
        %v1536 = vadd.f32 %v1367, %v1535
        %v1537 = vpop.f32.mrf.mxu0
        %v1538 = vpop.f32.mrf.mxu0
        %v1539 = vadd.f32 %v1367, %v1538
        %v1540 = vpop.f32.mrf.mxu0
        %1541 = vdwg.mxu0
        %v1542 = vsel %vm1056, %v1536, -inf
        %1543 = vmax.xlane.f32.xlu0 %v1542
        %v1544 = vpop.xlane.xlu0 %1543
        %v1545 = vsel %vm1056, %v1539, -inf
        %1546 = vmax.xlane.f32.xlu0 %v1545
        %v1547 = vpop.xlane.xlu0 %1546
        %v1548 = vsub.f32 %v1536, %v1544
        %v1549 = vsub.f32 %v1539, %v1547
        %v1550 = vmul.f32 %v1548, 1.442695
        %v1551 = vpow.pop %v1550
        %v1552 = vmul.f32 %v1549, 1.442695
        %v1553 = vpow.pop %v1552
        %v1554 = vsel %vm1056, %v1551, 0.0
        %1555 = vadd.xlane.f32.xlu0 %v1554
        %v1556 = vpop.xlane.xlu0 %1555
        %v1557 = vsel %vm1056, %v1553, 0.0
        %1558 = vadd.xlane.f32.xlu0 %v1557
        %v1559 = vpop.xlane.xlu0 %1558
        %v1560 = vrcp.pop %v1556
        %v1561 = vrcp.pop %v1559
        %v1562 = vmul.f32 %v1551, %v1560
        %v1563 = vmul.f32 %v1553, %v1561
        %v1564 = vpack.c.bf16 %v1563, %v1562
        %1565 = vrot.lane.b32.xlu0 %v1362, 80
        %v1566 = vpop.permute.xlu0 %1565
        %v1568 = vsel %vm1056, %v1564, 0
        %v1571 = vsel %vm1086, %v1566, 0
        %1573 = vmatprep.subr.bf16.mxu0 0
        %1574 = vmatpush1.bf16.msra.mxu0 0
        %1575 = vmatprep.subr.bf16.mxu0 0
        %1576 = vmatpush1.bf16.msra.mxu0 0
        %1577 = vmatprep.subr.bf16.mxu0 0
        %1578 = vmatpush1.bf16.msra.mxu0 0
        %1579 = vmatprep.subr.bf16.mxu0 0
        %1580 = vmatpush1.bf16.msra.mxu0 0
        %1581 = vmatprep.subr.bf16.mxu0 0
        %1582 = vmatpush1.bf16.msra.mxu0 0
        %1583 = vmatprep.subr.bf16.mxu0 0
        %1584 = vmatpush1.bf16.msra.mxu0 0
        %1585 = vmatprep.subr.bf16.mxu0 0
        %1586 = vmatpush1.bf16.msra.mxu0 0
        %1587 = vmatprep.subr.bf16.mxu0 0
        %1588 = vmatpush1.bf16.msra.mxu0 %v1571
        %1589 = vmatprep.subr.bf16.mxu0 0
        %1590 = vmatpush2.bf16.msra.mxu0 0
        %1591 = vmatprep.subr.bf16.mxu0 0
        %1592 = vmatpush2.bf16.msra.mxu0 0
        %1593 = vmatprep.subr.bf16.mxu0 0
        %1594 = vmatpush2.bf16.msra.mxu0 0
        %1595 = vmatprep.subr.bf16.mxu0 0
        %1596 = vmatpush2.bf16.msra.mxu0 0
        %1597 = vmatprep.subr.bf16.mxu0 0
        %1598 = vmatpush2.bf16.msra.mxu0 0
        %1599 = vmatprep.subr.bf16.mxu0 0
        %1600 = vmatpush2.bf16.msra.mxu0 0
        %1601 = vmatprep.subr.bf16.mxu0 0
        %1602 = vmatpush2.bf16.msra.mxu0 0
        %1603 = vmatprep.subr.bf16.mxu0 0
        %1604 = vmatpush2.bf16.msra.mxu0 0
        %1605 = vmatprep.mubr.bf16.mxu0 0
        %1606 = vmatmul.mubr.bf16.gmra.mxu0 %v1568
        %v1607 = vpop.f32.mrf.mxu0
        %v1608 = vadd.f32 0.0, %v1607
        %v1609 = vpop.f32.mrf.mxu0
        %v1610 = vpop.f32.mrf.mxu0
        %v1611 = vadd.f32 0.0, %v1610
        %v1612 = vpop.f32.mrf.mxu0
        %1613 = vdwg.mxu0
        %v1614 = vpack.c.bf16 %v1611, %v1608
        %v1616 = vsel %vm1008, %v1614, 0
        %1618 = vmatprep.subr.bf16.mxu0 0
        %1619 = vmatpush1.bf16.msra.mxu0 0
        %1620 = vmatprep.subr.bf16.mxu0 0
        %1621 = vmatpush1.bf16.msra.mxu0 0
        %1622 = vmatprep.subr.bf16.mxu0 0
        %1623 = vmatpush1.bf16.msra.mxu0 0
        %1624 = vmatprep.subr.bf16.mxu0 0
        %1625 = vmatpush1.bf16.msra.mxu0 0
        %1626 = vmatprep.subr.bf16.mxu0 0
        %1627 = vmatpush1.bf16.msra.mxu0 0
        %1628 = vmatprep.subr.bf16.mxu0 0
        %1629 = vmatpush1.bf16.msra.mxu0 0
        %1630 = vmatprep.subr.bf16.mxu0 0
        %1631 = vmatpush1.bf16.msra.mxu0 0
        %1632 = vmatprep.subr.bf16.mxu0 0
        %1633 = vmatpush1.bf16.msra.mxu0 %v1261
        %1634 = vmatprep.subr.bf16.mxu0 0
        %1635 = vmatpush2.bf16.msra.mxu0 0
        %1636 = vmatprep.subr.bf16.mxu0 0
        %1637 = vmatpush2.bf16.msra.mxu0 0
        %1638 = vmatprep.subr.bf16.mxu0 0
        %1639 = vmatpush2.bf16.msra.mxu0 0
        %1640 = vmatprep.subr.bf16.mxu0 0
        %1641 = vmatpush2.bf16.msra.mxu0 0
        %1642 = vmatprep.subr.bf16.mxu0 0
        %1643 = vmatpush2.bf16.msra.mxu0 0
        %1644 = vmatprep.subr.bf16.mxu0 0
        %1645 = vmatpush2.bf16.msra.mxu0 0
        %1646 = vmatprep.subr.bf16.mxu0 0
        %1647 = vmatpush2.bf16.msra.mxu0 0
        %1648 = vmatprep.subr.bf16.mxu0 0
        %1649 = vmatpush2.bf16.msra.mxu0 0
        %1650 = vmatprep.mubr.bf16.mxu0 0
        %1651 = vmatmul.mubr.bf16.gmra.mxu0 %v1616
        %v1652 = vpop.f32.mrf.mxu0
        %v1653 = vadd.f32 0.0, %v1652
        %v1654 = vpop.f32.mrf.mxu0
        %v1655 = vpop.f32.mrf.mxu0
        %v1656 = vadd.f32 0.0, %v1655
        %v1657 = vpop.f32.mrf.mxu0
        %1658 = vdwg.mxu0
        %v1660 = vsel %vm1008, %v1489, 0
        %1662 = vmatprep.subr.bf16.mxu0 0
        %1663 = vmatpush1.bf16.msra.mxu0 0
        %1664 = vmatprep.subr.bf16.mxu0 0
        %1665 = vmatpush1.bf16.msra.mxu0 0
        %1666 = vmatprep.subr.bf16.mxu0 0
        %1667 = vmatpush1.bf16.msra.mxu0 0
        %1668 = vmatprep.subr.bf16.mxu0 0
        %1669 = vmatpush1.bf16.msra.mxu0 0
        %1670 = vmatprep.subr.bf16.mxu0 0
        %1671 = vmatpush1.bf16.msra.mxu0 0
        %1672 = vmatprep.subr.bf16.mxu0 0
        %1673 = vmatpush1.bf16.msra.mxu0 0
        %1674 = vmatprep.subr.bf16.mxu0 0
        %1675 = vmatpush1.bf16.msra.mxu0 0
        %1676 = vmatprep.subr.bf16.mxu0 0
        %1677 = vmatpush1.bf16.msra.mxu0 %v1311
        %1678 = vmatprep.subr.bf16.mxu0 0
        %1679 = vmatpush2.bf16.msra.mxu0 0
        %1680 = vmatprep.subr.bf16.mxu0 0
        %1681 = vmatpush2.bf16.msra.mxu0 0
        %1682 = vmatprep.subr.bf16.mxu0 0
        %1683 = vmatpush2.bf16.msra.mxu0 0
        %1684 = vmatprep.subr.bf16.mxu0 0
        %1685 = vmatpush2.bf16.msra.mxu0 0
        %1686 = vmatprep.subr.bf16.mxu0 0
        %1687 = vmatpush2.bf16.msra.mxu0 0
        %1688 = vmatprep.subr.bf16.mxu0 0
        %1689 = vmatpush2.bf16.msra.mxu0 0
        %1690 = vmatprep.subr.bf16.mxu0 0
        %1691 = vmatpush2.bf16.msra.mxu0 0
        %1692 = vmatprep.subr.bf16.mxu0 0
        %1693 = vmatpush2.bf16.msra.mxu0 0
        %1694 = vmatprep.mubr.bf16.mxu0 0
        %1695 = vmatmul.mubr.bf16.gmra.mxu0 %v1660
        %v1696 = vpop.f32.mrf.mxu0
        %v1697 = vadd.f32 %v1653, %v1696
        %v1698 = vpop.f32.mrf.mxu0
        %v1699 = vpop.f32.mrf.mxu0
        %v1700 = vadd.f32 %v1656, %v1699
        %v1701 = vpop.f32.mrf.mxu0
        %1702 = vdwg.mxu0
        %v1703 = vadd.f32 %v727, %v1351
        %v1704 = vadd.f32 %v728, %v1354
        %v1705 = vadd.f32 %v729, %v1697
        %v1706 = vadd.f32 %v730, %v1700
        %v1707 = vld [vmem:[%s702] sm:$0x1]
        %v1709 = vlaneseq
        %v1710 = vshrl.u32 %v1709, 7
        %v1711 = vsub.s32 0, %v1710
        %v1712 = vrot.slane %v1707, %v1711
        %v1714 = vadd.f32 %v1703, %v1712
        %v1715 = vadd.f32 %v1704, %v1712
        %v1716 = vadd.f32 %v1705, %v1712
        %v1717 = vadd.f32 %v1706, %v1712
        %v1718 = vld [vmem:[%s722] sm:$0x1]
        %v1719 = vld [vmem:[%s725] sm:$0x1]
        %v1720 = vsel %vm749, %v1714, 0.0
        %1721 = vadd.xlane.f32.xlu0 %v1720
        %v1722 = vpop.xlane.xlu0 %1721
        %v1723 = vsel %vm749, %v1715, 0.0
        %1724 = vadd.xlane.f32.xlu0 %v1723
        %v1725 = vpop.xlane.xlu0 %1724
        %v1726 = vsel %vm749, %v1716, 0.0
        %1727 = vadd.xlane.f32.xlu0 %v1726
        %v1728 = vpop.xlane.xlu0 %1727
        %v1729 = vsel %vm749, %v1717, 0.0
        %1730 = vadd.xlane.f32.xlu0 %v1729
        %v1731 = vpop.xlane.xlu0 %1730
        %v1732 = vmul.f32 %v1722, %v762
        %v1733 = vmul.f32 %v1725, %v762
        %v1734 = vmul.f32 %v1728, %v762
        %v1735 = vmul.f32 %v1731, %v762
        %v1736 = vsub.f32 %v1714, %v1732
        %v1737 = vsub.f32 %v1715, %v1733
        %v1738 = vsub.f32 %v1716, %v1734
        %v1739 = vsub.f32 %v1717, %v1735
        %v1740 = vmul.f32 %v1736, %v1736
        %v1741 = vmul.f32 %v1737, %v1737
        %v1742 = vmul.f32 %v1738, %v1738
        %v1743 = vmul.f32 %v1739, %v1739
        %v1744 = vsel %vm749, %v1740, 0.0
        %1745 = vadd.xlane.f32.xlu0 %v1744
        %v1746 = vpop.xlane.xlu0 %1745
        %v1747 = vsel %vm749, %v1741, 0.0
        %1748 = vadd.xlane.f32.xlu0 %v1747
        %v1749 = vpop.xlane.xlu0 %1748
        %v1750 = vsel %vm749, %v1742, 0.0
        %1751 = vadd.xlane.f32.xlu0 %v1750
        %v1752 = vpop.xlane.xlu0 %1751
        %v1753 = vsel %vm749, %v1743, 0.0
        %1754 = vadd.xlane.f32.xlu0 %v1753
        %v1755 = vpop.xlane.xlu0 %1754
        %v1756 = vmul.f32 %v1746, %v762
        %v1757 = vmul.f32 %v1749, %v762
        %v1758 = vmul.f32 %v1752, %v762
        %v1759 = vmul.f32 %v1755, %v762
        %v1760 = vadd.f32 %v1756, 1e-05
        %v1761 = vadd.f32 %v1757, 1e-05
        %v1762 = vadd.f32 %v1758, 1e-05
        %v1763 = vadd.f32 %v1759, 1e-05
        %v1764 = vrsqrt.pop %v1760
        %v1765 = vrsqrt.pop %v1761
        %v1766 = vrsqrt.pop %v1762
        %v1767 = vrsqrt.pop %v1763
        %v1768 = vmul.f32 %v1736, %v1764
        %v1769 = vmul.f32 %v1737, %v1765
        %v1770 = vmul.f32 %v1738, %v1766
        %v1771 = vmul.f32 %v1739, %v1767
        %v1773 = vlaneseq
        %v1774 = vshrl.u32 %v1773, 7
        %v1775 = vsub.s32 0, %v1774
        %v1776 = vrot.slane %v1718, %v1775
        %v1778 = vmul.f32 %v1768, %v1776
        %v1779 = vmul.f32 %v1769, %v1776
        %v1780 = vmul.f32 %v1770, %v1776
        %v1781 = vmul.f32 %v1771, %v1776
        %v1783 = vlaneseq
        %v1784 = vshrl.u32 %v1783, 7
        %v1785 = vsub.s32 0, %v1784
        %v1786 = vrot.slane %v1719, %v1785
        %v1788 = vadd.f32 %v1778, %v1786
        %v1789 = vadd.f32 %v1779, %v1786
        %v1790 = vadd.f32 %v1780, %v1786
        %v1791 = vadd.f32 %v1781, %v1786
        %v1792 = vpack.c.bf16 %v1789, %v1788
        %v1793 = vpack.c.bf16 %v1791, %v1790
        %v1794 = vld [vmem:[%s587] sm:$0xf]
        %v1795 = vld [vmem:[%s587 + $0x4] sm:$0xf]
        %v1796 = vld [vmem:[%s587 + $0x8] sm:$0xf]
        %v1797 = vld [vmem:[%s587 + $0xc] sm:$0xf]
        %v1798 = vld [vmem:[%s711] sm:$0x1]
        %v1800 = vlaneseq
        %v1801 = vshrl.u32 %v1800, 7
        %v1802 = vsub.s32 0, %v1801
        %v1803 = vrot.slane %v1798, %v1802
        %v1809 = vunpack.c.l.b16 %v1794
        %v1810 = vunpack.c.l.b16 %v1795
        %v1811 = vunpack.c.l.b16 %v1796
        %v1812 = vunpack.c.l.b16 %v1797
        %v1813 = vpack.c.b16 %v1810, %v1809
        %v1814 = vpack.c.b16 %v1812, %v1811
        %v1818 = vsel %vm749, %v1792, 0
        %v1821 = vsel %vm749, %v1793, 0
        %1823 = vmatprep.subr.bf16.mxu0 0
        %1824 = vmatpush1.bf16.msra.mxu0 0
        %1825 = vmatprep.subr.bf16.mxu0 0
        %1826 = vmatpush1.bf16.msra.mxu0 0
        %1827 = vmatprep.subr.bf16.mxu0 0
        %1828 = vmatpush1.bf16.msra.mxu0 0
        %1829 = vmatprep.subr.bf16.mxu0 0
        %1830 = vmatpush1.bf16.msra.mxu0 0
        %1831 = vmatprep.subr.bf16.mxu0 0
        %1832 = vmatpush1.bf16.msra.mxu0 0
        %1833 = vmatprep.subr.bf16.mxu0 0
        %1834 = vmatpush1.bf16.msra.mxu0 0
        %1835 = vmatprep.subr.bf16.mxu0 0
        %1836 = vmatpush1.bf16.msra.mxu0 %v1814
        %1837 = vmatprep.subr.bf16.mxu0 0
        %1838 = vmatpush1.bf16.msra.mxu0 %v1813
        %1839 = vmatprep.subr.bf16.mxu0 0
        %1840 = vmatpush2.bf16.msra.mxu0 0
        %1841 = vmatprep.subr.bf16.mxu0 0
        %1842 = vmatpush2.bf16.msra.mxu0 0
        %1843 = vmatprep.subr.bf16.mxu0 0
        %1844 = vmatpush2.bf16.msra.mxu0 0
        %1845 = vmatprep.subr.bf16.mxu0 0
        %1846 = vmatpush2.bf16.msra.mxu0 0
        %1847 = vmatprep.subr.bf16.mxu0 0
        %1848 = vmatpush2.bf16.msra.mxu0 0
        %1849 = vmatprep.subr.bf16.mxu0 0
        %1850 = vmatpush2.bf16.msra.mxu0 0
        %1851 = vmatprep.subr.bf16.mxu0 0
        %1852 = vmatpush2.bf16.msra.mxu0 0
        %1853 = vmatprep.subr.bf16.mxu0 0
        %1854 = vmatpush2.bf16.msra.mxu0 0
        %1855 = vmatprep.mubr.bf16.mxu0 0
        %1856 = vmatmul.mubr.bf16.gmra.mxu0 %v1818
        %v1857 = vpop.f32.mrf.mxu0
        %v1858 = vadd.f32 %v1803, %v1857
        %v1859 = vpop.f32.mrf.mxu0
        %v1860 = vpop.f32.mrf.mxu0
        %v1861 = vadd.f32 %v1803, %v1860
        %v1862 = vpop.f32.mrf.mxu0
        %1863 = vmatprep.mubr.bf16.mxu0 0
        %1864 = vmatmul.mubr.bf16.gmra.mxu0 %v1821
        %v1865 = vpop.f32.mrf.mxu0
        %v1866 = vadd.f32 %v1803, %v1865
        %v1867 = vpop.f32.mrf.mxu0
        %v1868 = vpop.f32.mrf.mxu0
        %v1869 = vadd.f32 %v1803, %v1868
        %v1870 = vpop.f32.mrf.mxu0
        %1871 = vdwg.mxu0
        %v1872 = vmul.f32 %v1858, %v1858
        %v1873 = vmul.f32 %v1861, %v1861
        %v1874 = vmul.f32 %v1866, %v1866
        %v1875 = vmul.f32 %v1869, %v1869
        %v1876 = vmul.f32 %v1858, %v1872
        %v1877 = vmul.f32 %v1861, %v1873
        %v1878 = vmul.f32 %v1866, %v1874
        %v1879 = vmul.f32 %v1869, %v1875
        %v1880 = vmul.f32 %v1876, 0.044715
        %v1881 = vmul.f32 %v1877, 0.044715
        %v1882 = vmul.f32 %v1878, 0.044715
        %v1883 = vmul.f32 %v1879, 0.044715
        %v1884 = vadd.f32 %v1858, %v1880
        %v1885 = vadd.f32 %v1861, %v1881
        %v1886 = vadd.f32 %v1866, %v1882
        %v1887 = vadd.f32 %v1869, %v1883
        %v1888 = vmul.f32 %v1884, 0.7978846
        %v1889 = vmul.f32 %v1885, 0.7978846
        %v1890 = vmul.f32 %v1886, 0.7978846
        %v1891 = vmul.f32 %v1887, 0.7978846
        %v1892 = vtanh.pop %v1888
        %v1893 = vtanh.pop %v1889
        %v1894 = vtanh.pop %v1890
        %v1895 = vtanh.pop %v1891
        %v1896 = vadd.f32 %v1892, 1.0
        %v1897 = vadd.f32 %v1893, 1.0
        %v1898 = vadd.f32 %v1894, 1.0
        %v1899 = vadd.f32 %v1895, 1.0
        %v1900 = vmul.f32 %v1896, 0.5
        %v1901 = vmul.f32 %v1897, 0.5
        %v1902 = vmul.f32 %v1898, 0.5
        %v1903 = vmul.f32 %v1899, 0.5
        %v1904 = vmul.f32 %v1858, %v1900
        %v1905 = vmul.f32 %v1861, %v1901
        %v1906 = vmul.f32 %v1866, %v1902
        %v1907 = vmul.f32 %v1869, %v1903
        %v1908 = vpack.c.bf16 %v1905, %v1904
        %v1909 = vpack.c.bf16 %v1907, %v1906
        %v1910 = vld [vmem:[%s716] sm:$0xf]
        %v1911 = vld [vmem:[%s716 + $0x4] sm:$0xf]
        %v1912 = vld [vmem:[%s716 + $0x8] sm:$0xf]
        %v1913 = vld [vmem:[%s716 + $0xc] sm:$0xf]
        %v1914 = vld [vmem:[%s716 + $0x10] sm:$0xf]
        %v1915 = vld [vmem:[%s716 + $0x14] sm:$0xf]
        %v1916 = vld [vmem:[%s716 + $0x18] sm:$0xf]
        %v1917 = vld [vmem:[%s716 + $0x1c] sm:$0xf]
        %v1918 = vld [vmem:[%s716 + $0x20] sm:$0xf]
        %v1919 = vld [vmem:[%s716 + $0x24] sm:$0xf]
        %v1920 = vld [vmem:[%s716 + $0x28] sm:$0xf]
        %v1921 = vld [vmem:[%s716 + $0x2c] sm:$0xf]
        %v1922 = vld [vmem:[%s716 + $0x30] sm:$0xf]
        %v1923 = vld [vmem:[%s716 + $0x34] sm:$0xf]
        %v1924 = vld [vmem:[%s716 + $0x38] sm:$0xf]
        %v1925 = vld [vmem:[%s716 + $0x3c] sm:$0xf]
        %v1926 = vld [vmem:[%s719] sm:$0x1]
        %v1928 = vlaneseq
        %v1929 = vshrl.u32 %v1928, 7
        %v1930 = vsub.s32 0, %v1929
        %v1931 = vrot.slane %v1926, %v1930
        %v1949 = vunpack.c.l.b16 %v1910
        %v1950 = vunpack.c.l.b16 %v1911
        %v1951 = vunpack.c.l.b16 %v1912
        %v1952 = vunpack.c.l.b16 %v1913
        %v1953 = vunpack.c.l.b16 %v1914
        %v1954 = vunpack.c.l.b16 %v1915
        %v1955 = vunpack.c.l.b16 %v1916
        %v1956 = vunpack.c.l.b16 %v1917
        %v1957 = vunpack.c.l.b16 %v1918
        %v1958 = vunpack.c.l.b16 %v1919
        %v1959 = vunpack.c.l.b16 %v1920
        %v1960 = vunpack.c.l.b16 %v1921
        %v1961 = vunpack.c.l.b16 %v1922
        %v1962 = vunpack.c.l.b16 %v1923
        %v1963 = vunpack.c.l.b16 %v1924
        %v1964 = vunpack.c.l.b16 %v1925
        %v1965 = vpack.c.b16 %v1950, %v1949
        %v1966 = vpack.c.b16 %v1952, %v1951
        %v1967 = vpack.c.b16 %v1954, %v1953
        %v1968 = vpack.c.b16 %v1956, %v1955
        %v1969 = vpack.c.b16 %v1958, %v1957
        %v1970 = vpack.c.b16 %v1960, %v1959
        %v1971 = vpack.c.b16 %v1962, %v1961
        %v1972 = vpack.c.b16 %v1964, %v1963
        %1981 = vmatprep.subr.bf16.mxu0 0
        %1982 = vmatpush1.bf16.msra.mxu0 %v1972
        %1983 = vmatprep.subr.bf16.mxu0 0
        %1984 = vmatpush1.bf16.msra.mxu0 %v1971
        %1985 = vmatprep.subr.bf16.mxu0 0
        %1986 = vmatpush1.bf16.msra.mxu0 %v1970
        %1987 = vmatprep.subr.bf16.mxu0 0
        %1988 = vmatpush1.bf16.msra.mxu0 %v1969
        %1989 = vmatprep.subr.bf16.mxu0 0
        %1990 = vmatpush1.bf16.msra.mxu0 %v1968
        %1991 = vmatprep.subr.bf16.mxu0 0
        %1992 = vmatpush1.bf16.msra.mxu0 %v1967
        %1993 = vmatprep.subr.bf16.mxu0 0
        %1994 = vmatpush1.bf16.msra.mxu0 %v1966
        %1995 = vmatprep.subr.bf16.mxu0 0
        %1996 = vmatpush1.bf16.msra.mxu0 %v1965
        %1997 = vmatprep.subr.bf16.mxu0 0
        %1998 = vmatpush2.bf16.msra.mxu0 0
        %1999 = vmatprep.subr.bf16.mxu0 0
        %2000 = vmatpush2.bf16.msra.mxu0 0
        %2001 = vmatprep.subr.bf16.mxu0 0
        %2002 = vmatpush2.bf16.msra.mxu0 0
        %2003 = vmatprep.subr.bf16.mxu0 0
        %2004 = vmatpush2.bf16.msra.mxu0 0
        %2005 = vmatprep.subr.bf16.mxu0 0
        %2006 = vmatpush2.bf16.msra.mxu0 0
        %2007 = vmatprep.subr.bf16.mxu0 0
        %2008 = vmatpush2.bf16.msra.mxu0 0
        %2009 = vmatprep.subr.bf16.mxu0 0
        %2010 = vmatpush2.bf16.msra.mxu0 0
        %2011 = vmatprep.subr.bf16.mxu0 0
        %2012 = vmatpush2.bf16.msra.mxu0 0
        %2013 = vmatprep.mubr.bf16.mxu0 0
        %2014 = vmatmul.mubr.bf16.gmra.mxu0 %v1908
        %v2015 = vpop.f32.mrf.mxu0
        %v2016 = vadd.f32 %v1931, %v2015
        %v2017 = vpop.f32.mrf.mxu0
        %v2018 = vpop.f32.mrf.mxu0
        %v2019 = vadd.f32 %v1931, %v2018
        %v2020 = vpop.f32.mrf.mxu0
        %2021 = vmatprep.mubr.bf16.mxu0 0
        %2022 = vmatmul.mubr.bf16.gmra.mxu0 %v1909
        %v2023 = vpop.f32.mrf.mxu0
        %v2024 = vadd.f32 %v1931, %v2023
        %v2025 = vpop.f32.mrf.mxu0
        %v2026 = vpop.f32.mrf.mxu0
        %v2027 = vadd.f32 %v1931, %v2026
        %v2028 = vpop.f32.mrf.mxu0
        %2029 = vdwg.mxu0
        %2034 = vrot.lane.b32.xlu0 %v2016, 32
        %v2035 = vpop.permute.xlu0 %2034
        %2036 = vrot.lane.b32.xlu0 %v2019, 32
        %v2037 = vpop.permute.xlu0 %2036
        %2038 = vrot.lane.b32.xlu0 %v2024, 32
        %v2039 = vpop.permute.xlu0 %2038
        %2040 = vrot.lane.b32.xlu0 %v2027, 32
        %v2041 = vpop.permute.xlu0 %2040
        %v2046 = vadd.f32 %v727, %v2035
        %v2047 = vadd.f32 %v728, %v2037
        %v2048 = vadd.f32 %v729, %v2039
        %v2049 = vadd.f32 %v730, %v2041
        %2050 = vst.msk [vmem:[%s679] sm:$0xff] %vm749, %v1714
        %2051 = vst.msk [vmem:[%s679 + $0x8] sm:$0xff] %vm749, %v1715
        %2052 = vst.msk [vmem:[%s679 + $0x10] sm:$0xff] %vm749, %v1716
        %2053 = vst.msk [vmem:[%s679 + $0x18] sm:$0xff] %vm749, %v1717
        %vm2054 = vcmask 523520
        %2055 = vst.msk [vmem:[%s679] sm:$0xff] %vm2054, %v2046
        %2056 = vst.msk [vmem:[%s679 + $0x8] sm:$0xff] %vm2054, %v2047
        %2057 = vst.msk [vmem:[%s679 + $0x10] sm:$0xff] %vm2054, %v2048
        %2058 = vst.msk [vmem:[%s679 + $0x18] sm:$0xff] %vm2054, %v2049
        %s2059 = sand.u32 %s421, 1
        %s2060 = scalar_lea.sflag [#allocation4], %s2059
        %s2061 = sand.u32 %s421, 1
        %s2062 = smul.addr %s2061, 32
        %s2063 = scalar_lea.vmem [#allocation7], %s2062
        // Predicated region
        $region89: #{tpu_custom_call.1} parent=79 // pred_check
          %p2064 = pneg %p431
        $region90: #{tpu_custom_call.1} parent=79 // pred_check_branch
          %2066 = sbr.rel (%p2064) target = $region92
        $region91: #{tpu_custom_call.1} parent=79 // pred_region
          %s2068 = ssub.s32 512, 512
          %2069 = vsyncadd %s2060, %s2068
          %s2070 = smul.addr %s33, 4
          %s2071 = smul.addr %s2070, 128
          %s2072 = scalar_lea.hbm %s15, %s2071
          %s2073 = sshll.u32 %s2063, 4
          %s2074 = int_to_ptr.vmem [resolvable:$true] %s2073
          %2079 = dma.vmem_to_hbm [thread:$0]  %s2074, 512, %s2072, %s2060, 128, 128, 8
        $region92: #{tpu_custom_call.1} parent=79 // pred_fallthru
          _
      $region80: #{tpu_custom_call.1} parent=5 // pred_fallthru
        _
      %p2080 = scmp.le.s32.totalorder 2, %s28
      // Predicated region
      $region93: #{tpu_custom_call.1} parent=5 // pred_check
        %p2081 = pneg %p2080
      $region94: #{tpu_custom_call.1} parent=5 // pred_check_branch
        %2083 = sbr.rel (%p2081) target = $region96
      $region95: #{tpu_custom_call.1} parent=5 // pred_region
        %s2084 = ssub.s32 %s28, 2
        // Predicated region
        $region97: #{tpu_custom_call.1} parent=95 // pred_check
          %p2085 = pneg %p437
        $region98: #{tpu_custom_call.1} parent=95 // pred_check_branch
          %2087 = sbr.rel (%p2085) target = $region100
        $region99: #{tpu_custom_call.1} parent=95 // pred_region
          %s2088 = sand.u32 %s422, 1
          %s2089 = scalar_lea.sflag [#allocation4], %s2088
          %s2090 = sand.u32 %s422, 1
          %s2091 = smul.addr %s2090, 32
          %s2092 = scalar_lea.vmem [#allocation7], %s2091
          %2093 = dma.done %s2089, 512
        $region100: #{tpu_custom_call.1} parent=95 // pred_fallthru
          _
      $region96: #{tpu_custom_call.1} parent=5 // pred_fallthru
        _
    $region6: #{tpu_custom_call.1} parent=1 // loop_footer
      %s32 = sadd.s32 1, %s28
    $region7: #{tpu_custom_call.1} parent=1 // loop_footer_branch
      %27 = sbr.rel target = $region3
    $region8: #{tpu_custom_call.1} parent=1 // loop_exit
      _
    %2094 = vsyncpa [#allocation3], 1
    %s2095 = scalar_lea.sflag [#allocation3], 1
    %2096 = vsyncpa %s2095, 1
    %2097 = vsyncpa [#allocation6], 1
    %s2098 = scalar_lea.sflag [#allocation6], 1
    %2099 = vsyncpa %s2098, 1
    %2100 = vsyncpa [#allocation4], 1
    %s2101 = scalar_lea.sflag [#allocation4], 1
    %2102 = vsyncpa %s2101, 1

</llo_original>
